<compile_context>
chip_gen: v7x
topology: tpu7x:2x2x1
jax: 0.10.0
libtpu: 0.0.40
codegen_flags: <defaults>
</compile_context>

<pallas_src>
import jax
import jax.numpy as jnp
from jax.experimental import pallas as pl
from jax.experimental.pallas import tpu as pltpu


# ---------------------------------------------------------------------------
# Fused SAM forward
# ---------------------------------------------------------------------------
def sam_forward(x_nchw, x_img_nchw, params):
    x = x_nchw.astype(jnp.float32)          # (N, C, H, W)
    ximg = x_img_nchw.astype(jnp.float32)   # (N, 3, H, W)
    N, C, H, W = x.shape
    Hp, Wp = H + 2, W + 2
    Mp = H * Wp                 # flat output length (2 junk cols per row)
    Lp = Hp * Wp + 2            # padded-flat length (+2 keeps max tap offset in range)
    offs = tuple(dy * Wp + dx for dy in range(3) for dx in range(3))
    K12, K3 = 9 * C, 27

    # ---- host-side layout prep (cheap XLA ops; channel-major, bf16 x) ----
    xpad = jnp.pad(x, ((0, 0), (0, 0), (1, 1), (1, 1)))                    # (N,C,Hp,Wp)
    xflat = jnp.pad(xpad.reshape(N, C, Hp * Wp), ((0, 0), (0, 0), (0, 2)))
    xflat = xflat.astype(jnp.bfloat16)                                     # (N,C,Lp) bf16 DMA
    ximg_flat = jnp.pad(ximg, ((0, 0), (0, 0), (0, 0), (0, 2))).reshape(N, 3, Mp)

    # ---- fold weights: (O,I,3,3) -> (O, 9*I) with column order t*I + ci ----
    def fold_w(w_oihw):
        o, i = w_oihw.shape[0], w_oihw.shape[1]
        return jnp.transpose(w_oihw, (0, 2, 3, 1)).reshape(o, 9 * i)

    (w1, b1), (w2, b2), (w3, b3) = params['conv1'], params['conv2'], params['conv3']
    w12 = jnp.concatenate([fold_w(w1), fold_w(w2)], axis=0).astype(jnp.bfloat16)  # (C+3, 9C)
    b12 = jnp.concatenate([b1, b2])[:, None].astype(jnp.float32)                  # (C+3, 1)
    w3t = fold_w(w3).astype(jnp.bfloat16)                                         # (C, 27)
    b3r = b3[:, None].astype(jnp.float32)                                         # (C, 1)

    # ---- the fused kernel (one image per grid step) ----
    def kernel(xflat_ref, ximg_ref, w12_ref, b12_ref, w3_ref, b3_ref,
               x1_ref, img_ref, ipad_ref, stk12_ref, stk3_ref):
        # conv1|conv2: stack the 9 tap windows once (bf16, no per-tap casts),
        # then a single stacked-K bf16 matmul with f32 accumulation.
        for t, off in enumerate(offs):
            stk12_ref[t * C:(t + 1) * C, :] = xflat_ref[0, :, off:off + Mp]
        y12 = jnp.dot(w12_ref[...], stk12_ref[...],
                      preferred_element_type=jnp.float32) + b12_ref[...]     # (C+3, Mp)

        img = y12[C:, :] + ximg_ref[0]                                       # (3, Mp) f32
        img_ref[0] = img.astype(img_ref.dtype)

        # Junk-column mask (w >= W) generated from a lane iota — no HBM input.
        col = jax.lax.broadcasted_iota(jnp.int32, (1, Mp), 1)
        img_m = jnp.where((col % Wp) < W, img, 0.0)                          # (3, Mp)

        # Padded-flat img stays in VMEM for conv3. Only the border strips are
        # re-zeroed per step (interior is fully overwritten); this stays
        # correct under megacore grid sharding (no reliance on program_id==0).
        ipad_ref[:, 0:Wp + 1] = jnp.zeros((3, Wp + 1), jnp.float32)
        ipad_ref[:, Wp + 1 + Mp:Lp] = jnp.zeros((3, Wp + 1), jnp.float32)
        ipad_ref[:, Wp + 1:Wp + 1 + Mp] = img_m

        # conv3: stack 9 taps, one bf16 matmul (single cast of the stacked LHS).
        for t, off in enumerate(offs):
            stk3_ref[t * 3:(t + 1) * 3, :] = ipad_ref[:, off:off + Mp]
        z = jnp.dot(w3_ref[...], stk3_ref[...].astype(jnp.bfloat16),
                    preferred_element_type=jnp.float32) + b3_ref[...]        # (C, Mp)
        x2 = pl.reciprocal(1.0 + jnp.exp(-z), approx=True)                   # sigmoid (EUP)

        x_res = xflat_ref[0, :, Wp + 1:Wp + 1 + Mp].astype(jnp.float32)      # residual x
        x1_ref[0] = (y12[:C, :] * x2 + x_res).astype(x1_ref.dtype)

    x1_flat, img_flat = pl.pallas_call(
        kernel,
        out_shape=(jax.ShapeDtypeStruct((N, C, Mp), jnp.float32),
                   jax.ShapeDtypeStruct((N, 3, Mp), jnp.float32)),
        grid=(N,),
        in_specs=[
            pl.BlockSpec((1, C, Lp), lambda n: (n, 0, 0)),     # padded-flat x (bf16)
            pl.BlockSpec((1, 3, Mp), lambda n: (n, 0, 0)),     # x_img (output-flat)
            pl.BlockSpec((C + 3, K12), lambda n: (0, 0)),      # merged conv1|conv2 W (resident)
            pl.BlockSpec((C + 3, 1), lambda n: (0, 0)),        # merged bias (resident)
            pl.BlockSpec((C, K3), lambda n: (0, 0)),           # conv3 W (resident)
            pl.BlockSpec((C, 1), lambda n: (0, 0)),            # conv3 bias (resident)
        ],
        out_specs=(pl.BlockSpec((1, C, Mp), lambda n: (n, 0, 0)),
                   pl.BlockSpec((1, 3, Mp), lambda n: (n, 0, 0))),
        scratch_shapes=[pltpu.VMEM((3, Lp), jnp.float32),       # padded img for conv3
                        pltpu.VMEM((K12, Mp), jnp.bfloat16),    # stacked LHS conv1|conv2
                        pltpu.VMEM((K3, Mp), jnp.float32)],     # stacked LHS conv3
        compiler_params=pltpu.CompilerParams(
            dimension_semantics=("parallel",),
            vmem_limit_bytes=32 * 1024 * 1024),
    )(xflat, ximg_flat, w12, b12, w3t, b3r)

    # Drop the 2 junk columns per row; already NCHW (no transposes needed).
    x1 = x1_flat.reshape(N, C, H, Wp)[..., :W]
    img = img_flat.reshape(N, 3, H, Wp)[..., :W]
    return x1, img


# ---------------------------------------------------------------------------
# Pure-JAX reference (for verification)
# ---------------------------------------------------------------------------
def _reference_forward(x_nchw, x_img_nchw, params):
    x = x_nchw.astype(jnp.float32)
    ximg = x_img_nchw.astype(jnp.float32)

    def conv(inp, w_oihw, b):
        y = jax.lax.conv_general_dilated(
            inp, w_oihw, (1, 1), 'SAME',
            dimension_numbers=('NCHW', 'OIHW', 'NCHW'),
            precision=jax.lax.Precision.HIGHEST)
        return y + b[None, :, None, None]

    x1 = conv(x, *params['conv1'])
    img = conv(x, *params['conv2']) + ximg
    x2 = jax.nn.sigmoid(conv(img, *params['conv3']))
    return x1 * x2 + x, img


# ---------------------------------------------------------------------------
# Deterministic parameter init (shapes from SAM.__init__: n_feat, k=3, bias=True)
# ---------------------------------------------------------------------------
def init_params(key, n_feat):
    def conv_params(k, cin, cout):
        k1, k2 = jax.random.split(k)
        w = 0.1 * jax.random.normal(k1, (cout, cin, 3, 3), jnp.float32)
        b = 0.1 * jax.random.normal(k2, (cout,), jnp.float32)
        return (w, b)

    k1, k2, k3 = jax.random.split(key, 3)
    return {'conv1': conv_params(k1, n_feat, n_feat),
            'conv2': conv_params(k2, n_feat, 3),
            'conv3': conv_params(k3, 3, n_feat)}


if __name__ == "__main__":
    key = jax.random.PRNGKey(0)
    kx, ki, kp = jax.random.split(key, 3)

    N, C, H, W = 2, 4, 16, 16
    x = jax.random.normal(kx, (N, C, H, W), jnp.float32)
    x_img = jax.random.normal(ki, (N, 3, H, W), jnp.float32)
    params = init_params(kp, C)

    fwd = jax.jit(sam_forward)
    x1, img = fwd(x, x_img, params)
    x1 = jax.block_until_ready(x1)
    img = jax.block_until_ready(img)

    ref_x1, ref_img = _reference_forward(x, x_img, params)
    assert x1.shape == (N, C, H, W) and img.shape == (N, 3, H, W)
    err_x1 = float(jnp.max(jnp.abs(x1 - ref_x1)))
    err_img = float(jnp.max(jnp.abs(img - ref_img)))
    # bf16 activations/weights with f32 accumulation -> ~1e-2-level error
    assert jnp.allclose(x1, ref_x1, atol=5e-2, rtol=5e-2), f"x1 max_err={err_x1}"
    assert jnp.allclose(img, ref_img, atol=5e-2, rtol=5e-2), f"img max_err={err_img}"

    print("KERNEL_OK")
</pallas_src>

<mosaic_0001>
module attributes {stable_mosaic.version = 11 : i64} {
  func.func @kernel(%arg0: i32, %arg1: memref<1x4x326xbf16, #tpu.memory_space<vmem>>, %arg2: memref<1x3x288xf32, #tpu.memory_space<vmem>>, %arg3: memref<7x36xbf16, #tpu.memory_space<vmem>>, %arg4: memref<7x1xf32, #tpu.memory_space<vmem>>, %arg5: memref<4x27xbf16, #tpu.memory_space<vmem>>, %arg6: memref<4x1xf32, #tpu.memory_space<vmem>>, %arg7: memref<1x4x288xf32, #tpu.memory_space<vmem>>, %arg8: memref<1x3x288xf32, #tpu.memory_space<vmem>>, %arg9: memref<3x326xf32, #tpu.memory_space<vmem>>, %arg10: memref<36x288xbf16, #tpu.memory_space<vmem>>, %arg11: memref<27x288xf32, #tpu.memory_space<vmem>>) attributes {dimension_semantics = [#tpu.dimension_semantics<parallel>], iteration_bounds = array<i64: 2>, scalar_prefetch = 0 : i64, scratch_operands = 3 : i64, tpu.core_type = #tpu.core_type<tc>, window_params = [{transform_indices = @transform_0, window_bounds = array<i64: 1, 4, 326>}, {transform_indices = @transform_1, window_bounds = array<i64: 1, 3, 288>}, {pipeline_mode = #tpu.pipeline_mode<synchronous>, transform_indices = @transform_2, window_bounds = array<i64: 7, 36>}, {pipeline_mode = #tpu.pipeline_mode<synchronous>, transform_indices = @transform_3, window_bounds = array<i64: 7, 1>}, {pipeline_mode = #tpu.pipeline_mode<synchronous>, transform_indices = @transform_4, window_bounds = array<i64: 4, 27>}, {pipeline_mode = #tpu.pipeline_mode<synchronous>, transform_indices = @transform_5, window_bounds = array<i64: 4, 1>}, {transform_indices = @transform_6, window_bounds = array<i64: 1, 4, 288>}, {transform_indices = @transform_7, window_bounds = array<i64: 1, 3, 288>}]} {
    %c0 = arith.constant 0 : index
    %c0_0 = arith.constant 0 : index
    %c0_1 = arith.constant 0 : index
    %0 = vector.load %arg1[%c0, %c0_0, %c0_1] : memref<1x4x326xbf16, #tpu.memory_space<vmem>>, vector<1x4x288xbf16>
    %1 = vector.shape_cast %0 : vector<1x4x288xbf16> to vector<4x288xbf16>
    %c0_2 = arith.constant 0 : index
    %c0_3 = arith.constant 0 : index
    %2 = vector.load %arg10[%c0_2, %c0_3] : memref<36x288xbf16, #tpu.memory_space<vmem>>, vector<4x288xbf16>
    tpu.vector_store %arg10[%c0_2, %c0_3], %1 {strides = array<i32>} : memref<36x288xbf16, #tpu.memory_space<vmem>>, vector<4x288xbf16>,
    %c0_4 = arith.constant 0 : index
    %c0_5 = arith.constant 0 : index
    %c1 = arith.constant 1 : index
    %3 = vector.load %arg1[%c0_4, %c0_5, %c1] : memref<1x4x326xbf16, #tpu.memory_space<vmem>>, vector<1x4x288xbf16>
    %4 = vector.shape_cast %3 : vector<1x4x288xbf16> to vector<4x288xbf16>
    %c4 = arith.constant 4 : index
    %c0_6 = arith.constant 0 : index
    %5 = vector.load %arg10[%c4, %c0_6] : memref<36x288xbf16, #tpu.memory_space<vmem>>, vector<4x288xbf16>
    tpu.vector_store %arg10[%c4, %c0_6], %4 {strides = array<i32>} : memref<36x288xbf16, #tpu.memory_space<vmem>>, vector<4x288xbf16>,
    %c0_7 = arith.constant 0 : index
    %c0_8 = arith.constant 0 : index
    %c2 = arith.constant 2 : index
    %6 = vector.load %arg1[%c0_7, %c0_8, %c2] : memref<1x4x326xbf16, #tpu.memory_space<vmem>>, vector<1x4x288xbf16>
    %7 = vector.shape_cast %6 : vector<1x4x288xbf16> to vector<4x288xbf16>
    %c8 = arith.constant 8 : index
    %c0_9 = arith.constant 0 : index
    %8 = vector.load %arg10[%c8, %c0_9] : memref<36x288xbf16, #tpu.memory_space<vmem>>, vector<4x288xbf16>
    tpu.vector_store %arg10[%c8, %c0_9], %7 {strides = array<i32>} : memref<36x288xbf16, #tpu.memory_space<vmem>>, vector<4x288xbf16>,
    %c0_10 = arith.constant 0 : index
    %c0_11 = arith.constant 0 : index
    %c18 = arith.constant 18 : index
    %9 = vector.load %arg1[%c0_10, %c0_11, %c18] : memref<1x4x326xbf16, #tpu.memory_space<vmem>>, vector<1x4x288xbf16>
    %10 = vector.shape_cast %9 : vector<1x4x288xbf16> to vector<4x288xbf16>
    %c12 = arith.constant 12 : index
    %c0_12 = arith.constant 0 : index
    %11 = vector.load %arg10[%c12, %c0_12] : memref<36x288xbf16, #tpu.memory_space<vmem>>, vector<4x288xbf16>
    tpu.vector_store %arg10[%c12, %c0_12], %10 {strides = array<i32>} : memref<36x288xbf16, #tpu.memory_space<vmem>>, vector<4x288xbf16>,
    %c0_13 = arith.constant 0 : index
    %c0_14 = arith.constant 0 : index
    %c19 = arith.constant 19 : index
    %12 = vector.load %arg1[%c0_13, %c0_14, %c19] : memref<1x4x326xbf16, #tpu.memory_space<vmem>>, vector<1x4x288xbf16>
    %13 = vector.shape_cast %12 : vector<1x4x288xbf16> to vector<4x288xbf16>
    %c16 = arith.constant 16 : index
    %c0_15 = arith.constant 0 : index
    %14 = vector.load %arg10[%c16, %c0_15] : memref<36x288xbf16, #tpu.memory_space<vmem>>, vector<4x288xbf16>
    tpu.vector_store %arg10[%c16, %c0_15], %13 {strides = array<i32>} : memref<36x288xbf16, #tpu.memory_space<vmem>>, vector<4x288xbf16>,
    %c0_16 = arith.constant 0 : index
    %c0_17 = arith.constant 0 : index
    %c20 = arith.constant 20 : index
    %15 = vector.load %arg1[%c0_16, %c0_17, %c20] : memref<1x4x326xbf16, #tpu.memory_space<vmem>>, vector<1x4x288xbf16>
    %16 = vector.shape_cast %15 : vector<1x4x288xbf16> to vector<4x288xbf16>
    %c20_18 = arith.constant 20 : index
    %c0_19 = arith.constant 0 : index
    %17 = vector.load %arg10[%c20_18, %c0_19] : memref<36x288xbf16, #tpu.memory_space<vmem>>, vector<4x288xbf16>
    tpu.vector_store %arg10[%c20_18, %c0_19], %16 {strides = array<i32>} : memref<36x288xbf16, #tpu.memory_space<vmem>>, vector<4x288xbf16>,
    %c0_20 = arith.constant 0 : index
    %c0_21 = arith.constant 0 : index
    %c36 = arith.constant 36 : index
    %18 = vector.load %arg1[%c0_20, %c0_21, %c36] : memref<1x4x326xbf16, #tpu.memory_space<vmem>>, vector<1x4x288xbf16>
    %19 = vector.shape_cast %18 : vector<1x4x288xbf16> to vector<4x288xbf16>
    %c24 = arith.constant 24 : index
    %c0_22 = arith.constant 0 : index
    %20 = vector.load %arg10[%c24, %c0_22] : memref<36x288xbf16, #tpu.memory_space<vmem>>, vector<4x288xbf16>
    tpu.vector_store %arg10[%c24, %c0_22], %19 {strides = array<i32>} : memref<36x288xbf16, #tpu.memory_space<vmem>>, vector<4x288xbf16>,
    %c0_23 = arith.constant 0 : index
    %c0_24 = arith.constant 0 : index
    %c37 = arith.constant 37 : index
    %21 = vector.load %arg1[%c0_23, %c0_24, %c37] : memref<1x4x326xbf16, #tpu.memory_space<vmem>>, vector<1x4x288xbf16>
    %22 = vector.shape_cast %21 : vector<1x4x288xbf16> to vector<4x288xbf16>
    %c28 = arith.constant 28 : index
    %c0_25 = arith.constant 0 : index
    %23 = vector.load %arg10[%c28, %c0_25] : memref<36x288xbf16, #tpu.memory_space<vmem>>, vector<4x288xbf16>
    tpu.vector_store %arg10[%c28, %c0_25], %22 {strides = array<i32>} : memref<36x288xbf16, #tpu.memory_space<vmem>>, vector<4x288xbf16>,
    %c0_26 = arith.constant 0 : index
    %c0_27 = arith.constant 0 : index
    %c38 = arith.constant 38 : index
    %24 = vector.load %arg1[%c0_26, %c0_27, %c38] : memref<1x4x326xbf16, #tpu.memory_space<vmem>>, vector<1x4x288xbf16>
    %25 = vector.shape_cast %24 : vector<1x4x288xbf16> to vector<4x288xbf16>
    %c32 = arith.constant 32 : index
    %c0_28 = arith.constant 0 : index
    %26 = vector.load %arg10[%c32, %c0_28] : memref<36x288xbf16, #tpu.memory_space<vmem>>, vector<4x288xbf16>
    tpu.vector_store %arg10[%c32, %c0_28], %25 {strides = array<i32>} : memref<36x288xbf16, #tpu.memory_space<vmem>>, vector<4x288xbf16>,
    %c0_29 = arith.constant 0 : index
    %c0_30 = arith.constant 0 : index
    %27 = vector.load %arg3[%c0_29, %c0_30] : memref<7x36xbf16, #tpu.memory_space<vmem>>, vector<7x36xbf16>
    %c0_31 = arith.constant 0 : index
    %c0_32 = arith.constant 0 : index
    %28 = vector.load %arg10[%c0_31, %c0_32] : memref<36x288xbf16, #tpu.memory_space<vmem>>, vector<36x288xbf16>
    %cst = arith.constant dense<0.000000e+00> : vector<7x288xf32>
    %29 = tpu.matmul %27, %28, %cst {dimension_numbers = #tpu.dot_dimension_numbers<[1], [0], [0], [1], [0, 0, 1, 1], [], []>} : vector<7x36xbf16>, vector<36x288xbf16>, vector<7x288xf32> -> vector<7x288xf32>
    %c0_33 = arith.constant 0 : index
    %c0_34 = arith.constant 0 : index
    %30 = vector.load %arg4[%c0_33, %c0_34] : memref<7x1xf32, #tpu.memory_space<vmem>>, vector<7x1xf32>
    %31 = vector.broadcast %30 : vector<7x1xf32> to vector<7x288xf32>
    %32 = arith.addf %29, %31 : vector<7x288xf32>
    %33 = vector.extract_strided_slice %32 {offsets = [4, 0], sizes = [3, 288], strides = [1, 1]} : vector<7x288xf32> to vector<3x288xf32>
    %c0_35 = arith.constant 0 : index
    %c0_36 = arith.constant 0 : index
    %c0_37 = arith.constant 0 : index
    %34 = vector.load %arg2[%c0_35, %c0_36, %c0_37] : memref<1x3x288xf32, #tpu.memory_space<vmem>>, vector<1x3x288xf32>
    %35 = vector.shape_cast %34 : vector<1x3x288xf32> to vector<3x288xf32>
    %36 = arith.addf %33, %35 : vector<3x288xf32>
    %c0_38 = arith.constant 0 : index
    %c0_39 = arith.constant 0 : index
    %c0_40 = arith.constant 0 : index
    %37 = vector.load %arg8[%c0_38, %c0_39, %c0_40] : memref<1x3x288xf32, #tpu.memory_space<vmem>>, vector<1x3x288xf32>
    %38 = vector.shape_cast %37 : vector<1x3x288xf32> to vector<3x288xf32>
    %39 = vector.shape_cast %36 : vector<3x288xf32> to vector<1x3x288xf32>
    tpu.vector_store %arg8[%c0_38, %c0_39, %c0_40], %39 {strides = array<i32>} : memref<1x3x288xf32, #tpu.memory_space<vmem>>, vector<1x3x288xf32>,
    %40 = tpu.iota {dimensions = array<i32: 1>} : vector<1x288xi32>
    %c18_i32 = arith.constant 18 : i32
    %c0_i32 = arith.constant 0 : i32
    %41 = arith.cmpi eq, %c18_i32, %c0_i32 : i32
    %c1_i32 = arith.constant 1 : i32
    %42 = arith.select %41, %c1_i32, %c18_i32 : i32
    %43 = vector.broadcast %42 : i32 to vector<1x288xi32>
    %44 = arith.remsi %40, %43 : vector<1x288xi32>
    %c0_i32_41 = arith.constant 0 : i32
    %45 = vector.broadcast %c0_i32_41 : i32 to vector<1x288xi32>
    %46 = arith.cmpi ne, %44, %45 : vector<1x288xi32>
    %c0_i32_42 = arith.constant 0 : i32
    %47 = vector.broadcast %c0_i32_42 : i32 to vector<1x288xi32>
    %48 = arith.cmpi slt, %44, %47 : vector<1x288xi32>
    %c0_i32_43 = arith.constant 0 : i32
    %49 = arith.cmpi slt, %42, %c0_i32_43 : i32
    %50 = vector.broadcast %49 : i1 to vector<1x288xi1>
    %51 = vector.broadcast %50 : vector<1x288xi1> to vector<1x288xi1>
    %52 = arith.xori %48, %51 : vector<1x288xi1>
    %53 = arith.andi %52, %46 : vector<1x288xi1>
    %54 = vector.broadcast %42 : i32 to vector<1x288xi32>
    %55 = arith.addi %44, %54 : vector<1x288xi32>
    %56 = arith.select %53, %55, %44 : vector<1x288xi1>, vector<1x288xi32>
    %c16_i32 = arith.constant 16 : i32
    %57 = vector.broadcast %c16_i32 : i32 to vector<1x288xi32>
    %58 = arith.cmpi slt, %56, %57 : vector<1x288xi32>
    %cst_44 = arith.constant 0.000000e+00 : f32
    %59 = vector.shape_cast %58 : vector<1x288xi1> to vector<1x288xi1>
    %60 = vector.broadcast %59 : vector<1x288xi1> to vector<3x288xi1>
    %61 = vector.broadcast %cst_44 : f32 to vector<3x288xf32>
    %62 = arith.select %60, %36, %61 : vector<3x288xi1>, vector<3x288xf32>
    %cst_45 = arith.constant 0.000000e+00 : f32
    %63 = vector.broadcast %cst_45 : f32 to vector<3x19xf32>
    %c0_46 = arith.constant 0 : index
    %c0_47 = arith.constant 0 : index
    %64 = vector.load %arg9[%c0_46, %c0_47] : memref<3x326xf32, #tpu.memory_space<vmem>>, vector<3x19xf32>
    tpu.vector_store %arg9[%c0_46, %c0_47], %63 {strides = array<i32>} : memref<3x326xf32, #tpu.memory_space<vmem>>, vector<3x19xf32>,
    %cst_48 = arith.constant 0.000000e+00 : f32
    %65 = vector.broadcast %cst_48 : f32 to vector<3x19xf32>
    %c0_49 = arith.constant 0 : index
    %c307 = arith.constant 307 : index
    %66 = vector.load %arg9[%c0_49, %c307] : memref<3x326xf32, #tpu.memory_space<vmem>>, vector<3x19xf32>
    tpu.vector_store %arg9[%c0_49, %c307], %65 {strides = array<i32>} : memref<3x326xf32, #tpu.memory_space<vmem>>, vector<3x19xf32>,
    %c0_50 = arith.constant 0 : index
    %c19_51 = arith.constant 19 : index
    %67 = vector.load %arg9[%c0_50, %c19_51] : memref<3x326xf32, #tpu.memory_space<vmem>>, vector<3x288xf32>
    tpu.vector_store %arg9[%c0_50, %c19_51], %62 {strides = array<i32>} : memref<3x326xf32, #tpu.memory_space<vmem>>, vector<3x288xf32>,
    %c0_52 = arith.constant 0 : index
    %c0_53 = arith.constant 0 : index
    %68 = vector.load %arg9[%c0_52, %c0_53] : memref<3x326xf32, #tpu.memory_space<vmem>>, vector<3x288xf32>
    %c0_54 = arith.constant 0 : index
    %c0_55 = arith.constant 0 : index
    %69 = vector.load %arg11[%c0_54, %c0_55] : memref<27x288xf32, #tpu.memory_space<vmem>>, vector<3x288xf32>
    tpu.vector_store %arg11[%c0_54, %c0_55], %68 {strides = array<i32>} : memref<27x288xf32, #tpu.memory_space<vmem>>, vector<3x288xf32>,
    %c0_56 = arith.constant 0 : index
    %c1_57 = arith.constant 1 : index
    %70 = vector.load %arg9[%c0_56, %c1_57] : memref<3x326xf32, #tpu.memory_space<vmem>>, vector<3x288xf32>
    %c3 = arith.constant 3 : index
    %c0_58 = arith.constant 0 : index
    %71 = vector.load %arg11[%c3, %c0_58] : memref<27x288xf32, #tpu.memory_space<vmem>>, vector<3x288xf32>
    tpu.vector_store %arg11[%c3, %c0_58], %70 {strides = array<i32>} : memref<27x288xf32, #tpu.memory_space<vmem>>, vector<3x288xf32>,
    %c0_59 = arith.constant 0 : index
    %c2_60 = arith.constant 2 : index
    %72 = vector.load %arg9[%c0_59, %c2_60] : memref<3x326xf32, #tpu.memory_space<vmem>>, vector<3x288xf32>
    %c6 = arith.constant 6 : index
    %c0_61 = arith.constant 0 : index
    %73 = vector.load %arg11[%c6, %c0_61] : memref<27x288xf32, #tpu.memory_space<vmem>>, vector<3x288xf32>
    tpu.vector_store %arg11[%c6, %c0_61], %72 {strides = array<i32>} : memref<27x288xf32, #tpu.memory_space<vmem>>, vector<3x288xf32>,
    %c0_62 = arith.constant 0 : index
    %c18_63 = arith.constant 18 : index
    %74 = vector.load %arg9[%c0_62, %c18_63] : memref<3x326xf32, #tpu.memory_space<vmem>>, vector<3x288xf32>
    %c9 = arith.constant 9 : index
    %c0_64 = arith.constant 0 : index
    %75 = vector.load %arg11[%c9, %c0_64] : memref<27x288xf32, #tpu.memory_space<vmem>>, vector<3x288xf32>
    tpu.vector_store %arg11[%c9, %c0_64], %74 {strides = array<i32>} : memref<27x288xf32, #tpu.memory_space<vmem>>, vector<3x288xf32>,
    %c0_65 = arith.constant 0 : index
    %c19_66 = arith.constant 19 : index
    %76 = vector.load %arg9[%c0_65, %c19_66] : memref<3x326xf32, #tpu.memory_space<vmem>>, vector<3x288xf32>
    %c12_67 = arith.constant 12 : index
    %c0_68 = arith.constant 0 : index
    %77 = vector.load %arg11[%c12_67, %c0_68] : memref<27x288xf32, #tpu.memory_space<vmem>>, vector<3x288xf32>
    tpu.vector_store %arg11[%c12_67, %c0_68], %76 {strides = array<i32>} : memref<27x288xf32, #tpu.memory_space<vmem>>, vector<3x288xf32>,
    %c0_69 = arith.constant 0 : index
    %c20_70 = arith.constant 20 : index
    %78 = vector.load %arg9[%c0_69, %c20_70] : memref<3x326xf32, #tpu.memory_space<vmem>>, vector<3x288xf32>
    %c15 = arith.constant 15 : index
    %c0_71 = arith.constant 0 : index
    %79 = vector.load %arg11[%c15, %c0_71] : memref<27x288xf32, #tpu.memory_space<vmem>>, vector<3x288xf32>
    tpu.vector_store %arg11[%c15, %c0_71], %78 {strides = array<i32>} : memref<27x288xf32, #tpu.memory_space<vmem>>, vector<3x288xf32>,
    %c0_72 = arith.constant 0 : index
    %c36_73 = arith.constant 36 : index
    %80 = vector.load %arg9[%c0_72, %c36_73] : memref<3x326xf32, #tpu.memory_space<vmem>>, vector<3x288xf32>
    %c18_74 = arith.constant 18 : index
    %c0_75 = arith.constant 0 : index
    %81 = vector.load %arg11[%c18_74, %c0_75] : memref<27x288xf32, #tpu.memory_space<vmem>>, vector<3x288xf32>
    tpu.vector_store %arg11[%c18_74, %c0_75], %80 {strides = array<i32>} : memref<27x288xf32, #tpu.memory_space<vmem>>, vector<3x288xf32>,
    %c0_76 = arith.constant 0 : index
    %c37_77 = arith.constant 37 : index
    %82 = vector.load %arg9[%c0_76, %c37_77] : memref<3x326xf32, #tpu.memory_space<vmem>>, vector<3x288xf32>
    %c21 = arith.constant 21 : index
    %c0_78 = arith.constant 0 : index
    %83 = vector.load %arg11[%c21, %c0_78] : memref<27x288xf32, #tpu.memory_space<vmem>>, vector<3x288xf32>
    tpu.vector_store %arg11[%c21, %c0_78], %82 {strides = array<i32>} : memref<27x288xf32, #tpu.memory_space<vmem>>, vector<3x288xf32>,
    %c0_79 = arith.constant 0 : index
    %c38_80 = arith.constant 38 : index
    %84 = vector.load %arg9[%c0_79, %c38_80] : memref<3x326xf32, #tpu.memory_space<vmem>>, vector<3x288xf32>
    %c24_81 = arith.constant 24 : index
    %c0_82 = arith.constant 0 : index
    %85 = vector.load %arg11[%c24_81, %c0_82] : memref<27x288xf32, #tpu.memory_space<vmem>>, vector<3x288xf32>
    tpu.vector_store %arg11[%c24_81, %c0_82], %84 {strides = array<i32>} : memref<27x288xf32, #tpu.memory_space<vmem>>, vector<3x288xf32>,
    %c0_83 = arith.constant 0 : index
    %c0_84 = arith.constant 0 : index
    %86 = vector.load %arg5[%c0_83, %c0_84] : memref<4x27xbf16, #tpu.memory_space<vmem>>, vector<4x27xbf16>
    %c0_85 = arith.constant 0 : index
    %c0_86 = arith.constant 0 : index
    %87 = vector.load %arg11[%c0_85, %c0_86] : memref<27x288xf32, #tpu.memory_space<vmem>>, vector<27x288xf32>
    %88 = arith.truncf %87 : vector<27x288xf32> to vector<27x288xbf16>
    %cst_87 = arith.constant dense<0.000000e+00> : vector<4x288xf32>
    %89 = tpu.matmul %86, %88, %cst_87 {dimension_numbers = #tpu.dot_dimension_numbers<[1], [0], [0], [1], [0, 0, 1, 1], [], []>} : vector<4x27xbf16>, vector<27x288xbf16>, vector<4x288xf32> -> vector<4x288xf32>
    %c0_88 = arith.constant 0 : index
    %c0_89 = arith.constant 0 : index
    %90 = vector.load %arg6[%c0_88, %c0_89] : memref<4x1xf32, #tpu.memory_space<vmem>>, vector<4x1xf32>
    %91 = vector.broadcast %90 : vector<4x1xf32> to vector<4x288xf32>
    %92 = arith.addf %89, %91 : vector<4x288xf32>
    %cst_90 = arith.constant 0.000000e+00 : f32
    %93 = vector.broadcast %cst_90 : f32 to vector<4x288xf32>
    %94 = arith.subf %93, %92 : vector<4x288xf32>
    %95 = math.exp %94 : vector<4x288xf32>
    %cst_91 = arith.constant 1.000000e+00 : f32
    %96 = vector.broadcast %cst_91 : f32 to vector<4x288xf32>
    %97 = arith.addf %96, %95 : vector<4x288xf32>
    %98 = tpu.reciprocal %97 {approx = true} : vector<4x288xf32> -> vector<4x288xf32>
    %c0_92 = arith.constant 0 : index
    %c0_93 = arith.constant 0 : index
    %c19_94 = arith.constant 19 : index
    %99 = vector.load %arg1[%c0_92, %c0_93, %c19_94] : memref<1x4x326xbf16, #tpu.memory_space<vmem>>, vector<1x4x288xbf16>
    %100 = vector.shape_cast %99 : vector<1x4x288xbf16> to vector<4x288xbf16>
    %101 = arith.extf %100 : vector<4x288xbf16> to vector<4x288xf32>
    %102 = vector.extract_strided_slice %32 {offsets = [0, 0], sizes = [4, 288], strides = [1, 1]} : vector<7x288xf32> to vector<4x288xf32>
    %103 = arith.mulf %102, %98 : vector<4x288xf32>
    %104 = arith.addf %103, %101 : vector<4x288xf32>
    %c0_95 = arith.constant 0 : index
    %c0_96 = arith.constant 0 : index
    %c0_97 = arith.constant 0 : index
    %105 = vector.load %arg7[%c0_95, %c0_96, %c0_97] : memref<1x4x288xf32, #tpu.memory_space<vmem>>, vector<1x4x288xf32>
    %106 = vector.shape_cast %105 : vector<1x4x288xf32> to vector<4x288xf32>
    %107 = vector.shape_cast %104 : vector<4x288xf32> to vector<1x4x288xf32>
    tpu.vector_store %arg7[%c0_95, %c0_96, %c0_97], %107 {strides = array<i32>} : memref<1x4x288xf32, #tpu.memory_space<vmem>>, vector<1x4x288xf32>,
    return
  }
  func.func @transform_0(%arg0: i32) -> (i32, i32, i32) {
    %c0_i32 = arith.constant 0 : i32
    %c0_i32_0 = arith.constant 0 : i32
    %c0_i32_1 = arith.constant 0 : i32
    return %arg0, %c0_i32, %c0_i32_0 : i32, i32, i32
  }
  func.func @transform_1(%arg0: i32) -> (i32, i32, i32) {
    %c0_i32 = arith.constant 0 : i32
    %c0_i32_0 = arith.constant 0 : i32
    %c0_i32_1 = arith.constant 0 : i32
    return %arg0, %c0_i32, %c0_i32_0 : i32, i32, i32
  }
  func.func @transform_2(%arg0: i32) -> (i32, i32) {
    %c0_i32 = arith.constant 0 : i32
    %c0_i32_0 = arith.constant 0 : i32
    %c0_i32_1 = arith.constant 0 : i32
    return %c0_i32, %c0_i32_0 : i32, i32
  }
  func.func @transform_3(%arg0: i32) -> (i32, i32) {
    %c0_i32 = arith.constant 0 : i32
    %c0_i32_0 = arith.constant 0 : i32
    %c0_i32_1 = arith.constant 0 : i32
    return %c0_i32, %c0_i32_0 : i32, i32
  }
  func.func @transform_4(%arg0: i32) -> (i32, i32) {
    %c0_i32 = arith.constant 0 : i32
    %c0_i32_0 = arith.constant 0 : i32
    %c0_i32_1 = arith.constant 0 : i32
    return %c0_i32, %c0_i32_0 : i32, i32
  }
  func.func @transform_5(%arg0: i32) -> (i32, i32) {
    %c0_i32 = arith.constant 0 : i32
    %c0_i32_0 = arith.constant 0 : i32
    %c0_i32_1 = arith.constant 0 : i32
    return %c0_i32, %c0_i32_0 : i32, i32
  }
  func.func @transform_6(%arg0: i32) -> (i32, i32, i32) {
    %c0_i32 = arith.constant 0 : i32
    %c0_i32_0 = arith.constant 0 : i32
    %c0_i32_1 = arith.constant 0 : i32
    return %arg0, %c0_i32, %c0_i32_0 : i32, i32, i32
  }
  func.func @transform_7(%arg0: i32) -> (i32, i32, i32) {
    %c0_i32 = arith.constant 0 : i32
    %c0_i32_0 = arith.constant 0 : i32
    %c0_i32_1 = arith.constant 0 : i32
    return %arg0, %c0_i32, %c0_i32_0 : i32, i32, i32
  }
}

</mosaic_0001>

<llo_original>
// kernel: sam_forward.1
$region0: #{sam_forward.1}
  #allocation0 [shape = 'u32[]', space=smem, size = 0x4, offset = 0x4, fixed_abs, tag = 'smem constant byte address 0x4 - core index']
  #allocation1 [shape = 'u32[144,128]{1,0:T(1,128)}', space=vmem, size = 0x12000, scoped, tag = 'internal scratch']
  #allocation2 [shape = 'f32[3,326]{1,0:T(4,128)}', space=vmem, size = 0x1800, scoped, tag = 'scratch operand']
  #allocation3 [shape = 'bf16[36,288]{1,0:T(8,128)(2,1)}', space=vmem, size = 0x7800, scoped, tag = 'scratch operand']
  #allocation4 [shape = 'f32[27,288]{1,0:T(8,128)}', space=vmem, size = 0xc000, scoped, tag = 'scratch operand']
  %s0 = inlined_call_operand.vmem [shape: bf16[2,4,326], index: 0, kind: input, shape index: {}]
  %s1 = inlined_call_operand.vmem [shape: f32[2,3,288], index: 1, kind: input, shape index: {}]
  %s2 = inlined_call_operand.vmem [shape: bf16[7,36], index: 2, kind: input, shape index: {}]
  %s3 = inlined_call_operand.vmem [shape: f32[7,1], index: 3, kind: input, shape index: {}]
  %s4 = inlined_call_operand.vmem [shape: bf16[4,27], index: 4, kind: input, shape index: {}]
  %s5 = inlined_call_operand.vmem [shape: f32[4,1], index: 5, kind: input, shape index: {}]
  %s6 = inlined_call_operand.vmem [shape: f32[2,4,288], index: 6, kind: output, shape index: {0}]
  %s7 = inlined_call_operand.vmem [shape: f32[2,3,288], index: 7, kind: output, shape index: {1}]
  %8 = xla_tuple %s6, %s7
  %s9 = sld [smem:[#allocation0]]
  $region65: #{sam_forward.1} parent=0
    _
  %s11 = ssub.s32 1, %s9
  %s12 = scalar_select 0, %s11, %s9
  loop: start=0, step=1, limit=4
  $region2: #{sam_forward.1} parent=0 // loop_pre_header
    _
  $region3: #{sam_forward.1} parent=0 // loop_header
    %s14 = sphi 0, %s18
    %p15 = scmp.ge.s32.totalorder %s14, 4
    %s24 = sphi 0, %s26
    %s27 = sphi 0, %s24
    %s28 = sphi 0, %s27
    %s44 = sphi 0, %s28
    %s50 = sphi 0, %s52
    %s53 = sphi 0, %s50
    %s54 = sphi 0, %s53
    %s70 = sphi 0, %s54
    %s74 = sphi 0, %s74
    %s76 = sphi 0, %s74
    %s77 = sphi 0, %s76
    %s91 = sphi 0, %s77
    %s95 = sphi 0, %s95
    %s97 = sphi 0, %s95
    %s98 = sphi 0, %s97
    %s112 = sphi 0, %s98
    %s116 = sphi 0, %s116
    %s118 = sphi 0, %s116
    %s119 = sphi 0, %s118
    %s133 = sphi 0, %s119
    %s137 = sphi 0, %s137
    %s139 = sphi 0, %s137
    %s140 = sphi 0, %s139
    %s154 = sphi 0, %s140
    %s160 = sphi 0, %s162
    %s163 = sphi 0, %s160
    %s164 = sphi 0, %s163
    %s180 = sphi 0, %s164
    %s186 = sphi 0, %s188
    %s189 = sphi 0, %s186
    %s190 = sphi 0, %s189
    %s206 = sphi 0, %s190
  $region4: #{sam_forward.1} parent=0 // loop_header_branch
    %17 = sbr.rel (%p15) target = $region8
  $region5: #{sam_forward.1} parent=0 // loop_body
    %s19 = ssub.s32 %s14, 1
    %s20 = ssub.s32 %s14, 2
    %s21 = sadd.s32 %s14, 1
    %s22 = ssub.s32 %s14, %s21
    %p23 = scmp.eq.s32.totalorder %s22, 0
    %s25 = sadd.s32 %s24, 1
    %s26 = scalar_select %p23, %s24, %s25
    %p29 = pneg %p23
    %p30 = scmp.eq.s32.totalorder %s14, 1
    %p31 = por %p29, %p30
    %p32 = scmp.ne.s32.totalorder %s24, %s27
    %p33 = scmp.eq.s32.totalorder %s14, 0
    %p34 = por %p32, %p33
    %p35 = scmp.ne.s32.totalorder %s24, %s27
    %p36 = scmp.eq.s32.totalorder %s19, 1
    %p37 = por %p35, %p36
    %p38 = scmp.ne.s32.totalorder %s27, %s28
    %p39 = scmp.eq.s32.totalorder %s19, 0
    %p40 = por %p38, %p39
    %p41 = scmp.ne.s32.totalorder %s27, %s28
    %p42 = scmp.eq.s32.totalorder %s20, 1
    %p43 = por %p41, %p42
    %p45 = scmp.ne.s32.totalorder %s28, %s44
    %p46 = scmp.eq.s32.totalorder %s20, 0
    %p47 = por %p45, %p46
    %s48 = ssub.s32 %s14, %s21
    %p49 = scmp.eq.s32.totalorder %s48, 0
    %s51 = sadd.s32 %s50, 1
    %s52 = scalar_select %p49, %s50, %s51
    %p55 = pneg %p49
    %p56 = scmp.eq.s32.totalorder %s14, 1
    %p57 = por %p55, %p56
    %p58 = scmp.ne.s32.totalorder %s50, %s53
    %p59 = scmp.eq.s32.totalorder %s14, 0
    %p60 = por %p58, %p59
    %p61 = scmp.ne.s32.totalorder %s50, %s53
    %p62 = scmp.eq.s32.totalorder %s19, 1
    %p63 = por %p61, %p62
    %p64 = scmp.ne.s32.totalorder %s53, %s54
    %p65 = scmp.eq.s32.totalorder %s19, 0
    %p66 = por %p64, %p65
    %p67 = scmp.ne.s32.totalorder %s53, %s54
    %p68 = scmp.eq.s32.totalorder %s20, 1
    %p69 = por %p67, %p68
    %p71 = scmp.ne.s32.totalorder %s54, %s70
    %p72 = scmp.eq.s32.totalorder %s20, 0
    %p73 = por %p71, %p72
    %s75 = sadd.s32 %s74, 1
    %p78 = scmp.eq.s32.totalorder %s14, 1
    %p79 = scmp.ne.s32.totalorder %s74, %s76
    %p80 = scmp.eq.s32.totalorder %s14, 0
    %p81 = por %p79, %p80
    %p82 = scmp.ne.s32.totalorder %s74, %s76
    %p83 = scmp.eq.s32.totalorder %s19, 1
    %p84 = por %p82, %p83
    %p85 = scmp.ne.s32.totalorder %s76, %s77
    %p86 = scmp.eq.s32.totalorder %s19, 0
    %p87 = por %p85, %p86
    %p88 = scmp.ne.s32.totalorder %s76, %s77
    %p89 = scmp.eq.s32.totalorder %s20, 1
    %p90 = por %p88, %p89
    %p92 = scmp.ne.s32.totalorder %s77, %s91
    %p93 = scmp.eq.s32.totalorder %s20, 0
    %p94 = por %p92, %p93
    %s96 = sadd.s32 %s95, 1
    %p99 = scmp.eq.s32.totalorder %s14, 1
    %p100 = scmp.ne.s32.totalorder %s95, %s97
    %p101 = scmp.eq.s32.totalorder %s14, 0
    %p102 = por %p100, %p101
    %p103 = scmp.ne.s32.totalorder %s95, %s97
    %p104 = scmp.eq.s32.totalorder %s19, 1
    %p105 = por %p103, %p104
    %p106 = scmp.ne.s32.totalorder %s97, %s98
    %p107 = scmp.eq.s32.totalorder %s19, 0
    %p108 = por %p106, %p107
    %p109 = scmp.ne.s32.totalorder %s97, %s98
    %p110 = scmp.eq.s32.totalorder %s20, 1
    %p111 = por %p109, %p110
    %p113 = scmp.ne.s32.totalorder %s98, %s112
    %p114 = scmp.eq.s32.totalorder %s20, 0
    %p115 = por %p113, %p114
    %s117 = sadd.s32 %s116, 1
    %p120 = scmp.eq.s32.totalorder %s14, 1
    %p121 = scmp.ne.s32.totalorder %s116, %s118
    %p122 = scmp.eq.s32.totalorder %s14, 0
    %p123 = por %p121, %p122
    %p124 = scmp.ne.s32.totalorder %s116, %s118
    %p125 = scmp.eq.s32.totalorder %s19, 1
    %p126 = por %p124, %p125
    %p127 = scmp.ne.s32.totalorder %s118, %s119
    %p128 = scmp.eq.s32.totalorder %s19, 0
    %p129 = por %p127, %p128
    %p130 = scmp.ne.s32.totalorder %s118, %s119
    %p131 = scmp.eq.s32.totalorder %s20, 1
    %p132 = por %p130, %p131
    %p134 = scmp.ne.s32.totalorder %s119, %s133
    %p135 = scmp.eq.s32.totalorder %s20, 0
    %p136 = por %p134, %p135
    %s138 = sadd.s32 %s137, 1
    %p141 = scmp.eq.s32.totalorder %s14, 1
    %p142 = scmp.ne.s32.totalorder %s137, %s139
    %p143 = scmp.eq.s32.totalorder %s14, 0
    %p144 = por %p142, %p143
    %p145 = scmp.ne.s32.totalorder %s137, %s139
    %p146 = scmp.eq.s32.totalorder %s19, 1
    %p147 = por %p145, %p146
    %p148 = scmp.ne.s32.totalorder %s139, %s140
    %p149 = scmp.eq.s32.totalorder %s19, 0
    %p150 = por %p148, %p149
    %p151 = scmp.ne.s32.totalorder %s139, %s140
    %p152 = scmp.eq.s32.totalorder %s20, 1
    %p153 = por %p151, %p152
    %p155 = scmp.ne.s32.totalorder %s140, %s154
    %p156 = scmp.eq.s32.totalorder %s20, 0
    %p157 = por %p155, %p156
    %s158 = ssub.s32 %s14, %s21
    %p159 = scmp.eq.s32.totalorder %s158, 0
    %s161 = sadd.s32 %s160, 1
    %s162 = scalar_select %p159, %s160, %s161
    %p165 = pneg %p159
    %p166 = scmp.eq.s32.totalorder %s14, 1
    %p167 = por %p165, %p166
    %p168 = scmp.ne.s32.totalorder %s160, %s163
    %p169 = scmp.eq.s32.totalorder %s14, 0
    %p170 = por %p168, %p169
    %p171 = scmp.ne.s32.totalorder %s160, %s163
    %p172 = scmp.eq.s32.totalorder %s19, 1
    %p173 = por %p171, %p172
    %p174 = scmp.ne.s32.totalorder %s163, %s164
    %p175 = scmp.eq.s32.totalorder %s19, 0
    %p176 = por %p174, %p175
    %p177 = scmp.ne.s32.totalorder %s163, %s164
    %p178 = scmp.eq.s32.totalorder %s20, 1
    %p179 = por %p177, %p178
    %p181 = scmp.ne.s32.totalorder %s164, %s180
    %p182 = scmp.eq.s32.totalorder %s20, 0
    %p183 = por %p181, %p182
    %s184 = ssub.s32 %s14, %s21
    %p185 = scmp.eq.s32.totalorder %s184, 0
    %s187 = sadd.s32 %s186, 1
    %s188 = scalar_select %p185, %s186, %s187
    %p191 = pneg %p185
    %p192 = scmp.eq.s32.totalorder %s14, 1
    %p193 = por %p191, %p192
    %p194 = scmp.ne.s32.totalorder %s186, %s189
    %p195 = scmp.eq.s32.totalorder %s14, 0
    %p196 = por %p194, %p195
    %p197 = scmp.ne.s32.totalorder %s186, %s189
    %p198 = scmp.eq.s32.totalorder %s19, 1
    %p199 = por %p197, %p198
    %p200 = scmp.ne.s32.totalorder %s189, %s190
    %p201 = scmp.eq.s32.totalorder %s19, 0
    %p202 = por %p200, %p201
    %p203 = scmp.ne.s32.totalorder %s189, %s190
    %p204 = scmp.eq.s32.totalorder %s20, 1
    %p205 = por %p203, %p204
    %p207 = scmp.ne.s32.totalorder %s190, %s206
    %p208 = scmp.eq.s32.totalorder %s20, 0
    %p209 = por %p207, %p208
    %p210 = scmp.le.s32.totalorder 1, %s14
    %p211 = scmp.lt.s32.totalorder %s14, 3
    %p212 = pnand %p210, %p211
    %p213 = pneg %p212
    // Predicated region
    $region9: #{sam_forward.1} parent=5 // pred_check
      _
    $region10: #{sam_forward.1} parent=5 // pred_check_branch
      %215 = sbr.rel (%p212) target = $region12
    $region11: #{sam_forward.1} parent=5 // pred_region
      %s216 = ssub.s32 %s14, 1
      // Predicated region
      $region13: #{sam_forward.1} parent=11 // pred_check
        %p217 = pneg %p87
      $region14: #{sam_forward.1} parent=11 // pred_check_branch
        %219 = sbr.rel (%p217) target = $region16
      $region15: #{sam_forward.1} parent=11 // pred_region
        _
      $region16: #{sam_forward.1} parent=11 // pred_fallthru
        _
      // Predicated region
      $region17: #{sam_forward.1} parent=11 // pred_check
        %p220 = pneg %p108
      $region18: #{sam_forward.1} parent=11 // pred_check_branch
        %222 = sbr.rel (%p220) target = $region20
      $region19: #{sam_forward.1} parent=11 // pred_region
        _
      $region20: #{sam_forward.1} parent=11 // pred_fallthru
        _
      // Predicated region
      $region21: #{sam_forward.1} parent=11 // pred_check
        %p223 = pneg %p129
      $region22: #{sam_forward.1} parent=11 // pred_check_branch
        %225 = sbr.rel (%p223) target = $region24
      $region23: #{sam_forward.1} parent=11 // pred_region
        _
      $region24: #{sam_forward.1} parent=11 // pred_fallthru
        _
      // Predicated region
      $region25: #{sam_forward.1} parent=11 // pred_check
        %p226 = pneg %p150
      $region26: #{sam_forward.1} parent=11 // pred_check_branch
        %228 = sbr.rel (%p226) target = $region28
      $region27: #{sam_forward.1} parent=11 // pred_region
        _
      $region28: #{sam_forward.1} parent=11 // pred_fallthru
        _
    $region12: #{sam_forward.1} parent=5 // pred_fallthru
      _
    %p229 = scmp.lt.s32.totalorder %s14, 2
    // Predicated region
    $region29: #{sam_forward.1} parent=5 // pred_check
      %p230 = pneg %p229
    $region30: #{sam_forward.1} parent=5 // pred_check_branch
      %232 = sbr.rel (%p230) target = $region32
    $region31: #{sam_forward.1} parent=5 // pred_region
      // Predicated region
      $region33: #{sam_forward.1} parent=31 // pred_check
        %p233 = pneg %p34
      $region34: #{sam_forward.1} parent=31 // pred_check_branch
        %235 = sbr.rel (%p233) target = $region36
      $region35: #{sam_forward.1} parent=31 // pred_region
        %p236 = scmp.lt.s32.totalorder %s14, 1
        %s237 = scalar_select %p236, %s14, 1
        %s238 = smul.addr %s237, 3
        %s239 = smul.addr %s238, 2
        %s240 = scalar_lea.vmem %s0, %s239
      $region36: #{sam_forward.1} parent=31 // pred_fallthru
        _
      // Predicated region
      $region37: #{sam_forward.1} parent=31 // pred_check
        %p241 = pneg %p60
      $region38: #{sam_forward.1} parent=31 // pred_check_branch
        %243 = sbr.rel (%p241) target = $region40
      $region39: #{sam_forward.1} parent=31 // pred_region
        %p244 = scmp.lt.s32.totalorder %s14, 1
        %s245 = scalar_select %p244, %s14, 1
        %s246 = smul.addr %s245, 3
        %s247 = smul.addr %s246, 4
        %s248 = scalar_lea.vmem %s1, %s247
      $region40: #{sam_forward.1} parent=31 // pred_fallthru
        _
    $region32: #{sam_forward.1} parent=5 // pred_fallthru
      _
    %p249 = scmp.le.s32.totalorder 1, %s14
    %p250 = scmp.lt.s32.totalorder %s14, 3
    %p251 = pnand %p249, %p250
    %p252 = pneg %p251
    // Predicated region
    $region41: #{sam_forward.1} parent=5 // pred_check
      _
    $region42: #{sam_forward.1} parent=5 // pred_check_branch
      %254 = sbr.rel (%p251) target = $region44
    $region43: #{sam_forward.1} parent=5 // pred_region
      %s255 = ssub.s32 %s14, 1
      %p256 = scmp.lt.s32.totalorder %s19, 1
      %s257 = scalar_select %p256, %s19, 1
      %s258 = smul.addr %s257, 3
      %s259 = smul.addr %s258, 2
      %s260 = scalar_lea.vmem %s0, %s259
      %p261 = pneg %p40
      %p262 = pneg %p37
      %p263 = scmp.lt.s32.totalorder %s19, 1
      %s264 = scalar_select %p263, %s19, 1
      %s265 = smul.addr %s264, 3
      %s266 = smul.addr %s265, 4
      %s267 = scalar_lea.vmem %s1, %s266
      %p268 = pneg %p66
      %p269 = pneg %p63
      %p270 = pneg %p87
      %p271 = pneg %p84
      %p272 = pneg %p108
      %p273 = pneg %p105
      %p274 = pneg %p129
      %p275 = pneg %p126
      %p276 = pneg %p150
      %p277 = pneg %p147
      %p278 = pneg %p176
      %p279 = pneg %p173
      %p280 = scmp.lt.s32.totalorder %s19, 1
      %s281 = scalar_select %p280, %s19, 1
      %s282 = smul.addr %s281, 3
      %s283 = smul.addr %s282, 4
      %s284 = scalar_lea.vmem %s6, %s283
      %p285 = pneg %p202
      %p286 = pneg %p199
      %p287 = scmp.lt.s32.totalorder %s19, 1
      %s288 = scalar_select %p287, %s19, 1
      %s289 = smul.addr %s288, 3
      %s290 = smul.addr %s289, 4
      %s291 = scalar_lea.vmem %s7, %s290
      %p292 = scmp.lt.s32.totalorder %s19, 1
      %s293 = scalar_select %p292, %s19, 1
      %s294 = smul.addr %s293, 3
      %s295 = smul.addr %s294, 2
      %s296 = scalar_lea.vmem %s0, %s295
      %p297 = scmp.lt.s32.totalorder %s19, 1
      %s298 = scalar_select %p297, %s19, 1
      %s299 = smul.addr %s298, 3
      %s300 = smul.addr %s299, 4
      %s301 = scalar_lea.vmem %s1, %s300
      %p302 = scmp.lt.s32.totalorder %s19, 1
      %s303 = scalar_select %p302, %s19, 1
      %s304 = smul.addr %s303, 3
      %s305 = smul.addr %s304, 4
      %s306 = scalar_lea.vmem %s6, %s305
      %p307 = scmp.lt.s32.totalorder %s19, 1
      %s308 = scalar_select %p307, %s19, 1
      %s309 = smul.addr %s308, 3
      %s310 = smul.addr %s309, 4
      %s311 = scalar_lea.vmem %s7, %s310
      %v313 = vld [vmem:[%s296] sm:$0x3f]
      %v315 = vcombine.high %v313, %v313
      %v317 = vunpack.c.l.s4 1983009808
      %v318 = vunpack.c.0.s8 %v317
      %v319 = vlaneseq
      %v320 = vshrl.u32 %v319, 7
      %v321 = vsub.s32 %v318, %v320
      %v322 = vrot.slane %v313, %v321
      %v324 = vunpack.c.l.s4 1983009808
      %v325 = vunpack.c.0.s8 %v324
      %v326 = vlaneseq
      %v327 = vshrl.u32 %v326, 7
      %v328 = vsub.s32 %v325, %v327
      %v329 = vrot.slane %v315, %v328
      %332 = vst [vmem:[#allocation3] sm:$0x33] %v322
      %vm333 = vcmask 254976
      %334 = vst.msk [vmem:[#allocation3 + $0x8] sm:$0x3] %vm333, %v329
      %v335 = vld [vmem:[%s296] sm:$0x3f]
      %v337 = vcombine.low %v335, %v335
      %v339 = vunpack.c.l.s4 1983009808
      %v340 = vunpack.c.0.s8 %v339
      %v341 = vlaneseq
      %v342 = vshrl.u32 %v341, 7
      %v343 = vsub.s32 %v340, %v342
      %v344 = vrot.slane %v337, %v343
      %v346 = vunpack.c.l.s4 1983009808
      %v347 = vunpack.c.0.s8 %v346
      %v348 = vlaneseq
      %v349 = vshrl.u32 %v348, 7
      %v350 = vsub.s32 %v347, %v349
      %v351 = vrot.slane %v335, %v350
      %352 = vrot.lane.b32.xlu0 %v344, 127
      %v353 = vpop.permute.xlu0 %352
      %354 = vrot.lane.b32.xlu0 %v351, 127
      %v355 = vpop.permute.xlu0 %354
      %v356 = vrot.slane %v353, 4
      %v357 = vrot.slane %v355, 4
      %vm358 = vcmask 1043456
      %v359 = vsel %vm358, %v356, %v357
      %vm360 = vcmask 1039360
      %v361 = vsel %vm360, %v353, %v359
      %364 = vst [vmem:[#allocation3] sm:$0xcc] %v361
      %vm365 = vcmask 257026
      %366 = vst.msk [vmem:[#allocation3 + $0x8] sm:$0xc] %vm365, %v355
      %v367 = vld [vmem:[%s296] sm:$0x3f]
      %v369 = vcombine.high %v367, %v367
      %v371 = vunpack.c.l.s4 1983009808
      %v372 = vunpack.c.0.s8 %v371
      %v373 = vlaneseq
      %v374 = vshrl.u32 %v373, 7
      %v375 = vsub.s32 %v372, %v374
      %v376 = vrot.slane %v367, %v375
      %v378 = vunpack.c.l.s4 1983009808
      %v379 = vunpack.c.0.s8 %v378
      %v380 = vlaneseq
      %v381 = vshrl.u32 %v380, 7
      %v382 = vsub.s32 %v379, %v381
      %v383 = vrot.slane %v369, %v382
      %384 = vrot.lane.b32.xlu0 %v376, 126
      %v385 = vpop.permute.xlu0 %384
      %386 = vrot.lane.b32.xlu0 %v383, 126
      %v387 = vpop.permute.xlu0 %386
      %v388 = vrot.slane %v385, 4
      %v389 = vrot.slane %v387, 4
      %v390 = vsel %vm358, %v388, %v389
      %vm391 = vcmask 1031168
      %v392 = vsel %vm391, %v385, %v390
      %395 = vst [vmem:[#allocation3 + $0xc] sm:$0x33] %v392
      %396 = vst.msk [vmem:[#allocation3 + $0x14] sm:$0x3] %vm333, %v387
      %v397 = vld [vmem:[%s296] sm:$0x3f]
      %v399 = vcombine.low %v397, %v397
      %v401 = vunpack.c.l.s4 1983009808
      %v402 = vunpack.c.0.s8 %v401
      %v403 = vlaneseq
      %v404 = vshrl.u32 %v403, 7
      %v405 = vsub.s32 %v402, %v404
      %v406 = vrot.slane %v399, %v405
      %v408 = vunpack.c.l.s4 1983009808
      %v409 = vunpack.c.0.s8 %v408
      %v410 = vlaneseq
      %v411 = vshrl.u32 %v410, 7
      %v412 = vsub.s32 %v409, %v411
      %v413 = vrot.slane %v397, %v412
      %414 = vrot.lane.b32.xlu0 %v406, 110
      %v415 = vpop.permute.xlu0 %414
      %416 = vrot.lane.b32.xlu0 %v413, 110
      %v417 = vpop.permute.xlu0 %416
      %v418 = vrot.slane %v415, 4
      %v419 = vrot.slane %v417, 4
      %v420 = vsel %vm358, %v418, %v419
      %vm421 = vcmask 900096
      %v422 = vsel %vm421, %v415, %v420
      %425 = vst [vmem:[#allocation3 + $0xc] sm:$0xcc] %v422
      %426 = vst.msk [vmem:[#allocation3 + $0x14] sm:$0xc] %vm365, %v417
      %v427 = vld [vmem:[%s296] sm:$0x3f]
      %v429 = vcombine.high %v427, %v427
      %v431 = vunpack.c.l.s4 1983009808
      %v432 = vunpack.c.0.s8 %v431
      %v433 = vlaneseq
      %v434 = vshrl.u32 %v433, 7
      %v435 = vsub.s32 %v432, %v434
      %v436 = vrot.slane %v427, %v435
      %v438 = vunpack.c.l.s4 1983009808
      %v439 = vunpack.c.0.s8 %v438
      %v440 = vlaneseq
      %v441 = vshrl.u32 %v440, 7
      %v442 = vsub.s32 %v439, %v441
      %v443 = vrot.slane %v429, %v442
      %444 = vrot.lane.b32.xlu0 %v436, 109
      %v445 = vpop.permute.xlu0 %444
      %446 = vrot.lane.b32.xlu0 %v443, 109
      %v447 = vpop.permute.xlu0 %446
      %v448 = vrot.slane %v445, 4
      %v449 = vrot.slane %v447, 4
      %v450 = vsel %vm358, %v448, %v449
      %vm451 = vcmask 891904
      %v452 = vsel %vm451, %v445, %v450
      %455 = vst [vmem:[#allocation3 + $0x18] sm:$0x33] %v452
      %456 = vst.msk [vmem:[#allocation3 + $0x20] sm:$0x3] %vm333, %v447
      %v457 = vld [vmem:[%s296] sm:$0x3f]
      %v459 = vcombine.low %v457, %v457
      %v461 = vunpack.c.l.s4 1983009808
      %v462 = vunpack.c.0.s8 %v461
      %v463 = vlaneseq
      %v464 = vshrl.u32 %v463, 7
      %v465 = vsub.s32 %v462, %v464
      %v466 = vrot.slane %v459, %v465
      %v468 = vunpack.c.l.s4 1983009808
      %v469 = vunpack.c.0.s8 %v468
      %v470 = vlaneseq
      %v471 = vshrl.u32 %v470, 7
      %v472 = vsub.s32 %v469, %v471
      %v473 = vrot.slane %v457, %v472
      %474 = vrot.lane.b32.xlu0 %v466, 108
      %v475 = vpop.permute.xlu0 %474
      %476 = vrot.lane.b32.xlu0 %v473, 108
      %v477 = vpop.permute.xlu0 %476
      %v478 = vrot.slane %v475, 4
      %v479 = vrot.slane %v477, 4
      %v480 = vsel %vm358, %v478, %v479
      %vm481 = vcmask 883712
      %v482 = vsel %vm481, %v475, %v480
      %485 = vst [vmem:[#allocation3 + $0x18] sm:$0xcc] %v482
      %486 = vst.msk [vmem:[#allocation3 + $0x20] sm:$0xc] %vm365, %v477
      %v487 = vld [vmem:[%s296] sm:$0x3f]
      %v489 = vcombine.high %v487, %v487
      %v491 = vunpack.c.l.s4 1983009808
      %v492 = vunpack.c.0.s8 %v491
      %v493 = vlaneseq
      %v494 = vshrl.u32 %v493, 7
      %v495 = vsub.s32 %v492, %v494
      %v496 = vrot.slane %v487, %v495
      %v498 = vunpack.c.l.s4 1983009808
      %v499 = vunpack.c.0.s8 %v498
      %v500 = vlaneseq
      %v501 = vshrl.u32 %v500, 7
      %v502 = vsub.s32 %v499, %v501
      %v503 = vrot.slane %v489, %v502
      %504 = vrot.lane.b32.xlu0 %v496, 92
      %v505 = vpop.permute.xlu0 %504
      %506 = vrot.lane.b32.xlu0 %v503, 92
      %v507 = vpop.permute.xlu0 %506
      %v508 = vrot.slane %v505, 4
      %v509 = vrot.slane %v507, 4
      %v510 = vsel %vm358, %v508, %v509
      %vm511 = vcmask 752640
      %v512 = vsel %vm511, %v505, %v510
      %515 = vst [vmem:[#allocation3 + $0x24] sm:$0x33] %v512
      %516 = vst.msk [vmem:[#allocation3 + $0x2c] sm:$0x3] %vm333, %v507
      %v517 = vld [vmem:[%s296] sm:$0x3f]
      %v519 = vcombine.low %v517, %v517
      %v521 = vunpack.c.l.s4 1983009808
      %v522 = vunpack.c.0.s8 %v521
      %v523 = vlaneseq
      %v524 = vshrl.u32 %v523, 7
      %v525 = vsub.s32 %v522, %v524
      %v526 = vrot.slane %v519, %v525
      %v528 = vunpack.c.l.s4 1983009808
      %v529 = vunpack.c.0.s8 %v528
      %v530 = vlaneseq
      %v531 = vshrl.u32 %v530, 7
      %v532 = vsub.s32 %v529, %v531
      %v533 = vrot.slane %v517, %v532
      %534 = vrot.lane.b32.xlu0 %v526, 91
      %v535 = vpop.permute.xlu0 %534
      %536 = vrot.lane.b32.xlu0 %v533, 91
      %v537 = vpop.permute.xlu0 %536
      %v538 = vrot.slane %v535, 4
      %v539 = vrot.slane %v537, 4
      %v540 = vsel %vm358, %v538, %v539
      %vm541 = vcmask 744448
      %v542 = vsel %vm541, %v535, %v540
      %545 = vst [vmem:[#allocation3 + $0x24] sm:$0xcc] %v542
      %546 = vst.msk [vmem:[#allocation3 + $0x2c] sm:$0xc] %vm365, %v537
      %v547 = vld [vmem:[%s296] sm:$0x3f]
      %v549 = vcombine.high %v547, %v547
      %v551 = vunpack.c.l.s4 1983009808
      %v552 = vunpack.c.0.s8 %v551
      %v553 = vlaneseq
      %v554 = vshrl.u32 %v553, 7
      %v555 = vsub.s32 %v552, %v554
      %v556 = vrot.slane %v547, %v555
      %v558 = vunpack.c.l.s4 1983009808
      %v559 = vunpack.c.0.s8 %v558
      %v560 = vlaneseq
      %v561 = vshrl.u32 %v560, 7
      %v562 = vsub.s32 %v559, %v561
      %v563 = vrot.slane %v549, %v562
      %564 = vrot.lane.b32.xlu0 %v556, 90
      %v565 = vpop.permute.xlu0 %564
      %566 = vrot.lane.b32.xlu0 %v563, 90
      %v567 = vpop.permute.xlu0 %566
      %v568 = vrot.slane %v565, 4
      %v569 = vrot.slane %v567, 4
      %v570 = vsel %vm358, %v568, %v569
      %vm571 = vcmask 736256
      %v572 = vsel %vm571, %v565, %v570
      %575 = vst [vmem:[#allocation3 + $0x30] sm:$0x33] %v572
      %576 = vst.msk [vmem:[#allocation3 + $0x38] sm:$0x3] %vm333, %v567
      %v577 = vld [vmem:[%s2] sm:$0xf]
      %v578 = vld [vmem:[#allocation3] sm:$0xff]
      %v579 = vld [vmem:[#allocation3 + $0x8] sm:$0xf]
      %v580 = vld [vmem:[#allocation3 + $0xc] sm:$0xff]
      %v581 = vld [vmem:[#allocation3 + $0x14] sm:$0xf]
      %v582 = vld [vmem:[#allocation3 + $0x18] sm:$0xff]
      %v583 = vld [vmem:[#allocation3 + $0x20] sm:$0xf]
      %v584 = vld [vmem:[#allocation3 + $0x24] sm:$0xff]
      %v585 = vld [vmem:[#allocation3 + $0x2c] sm:$0xf]
      %v586 = vld [vmem:[#allocation3 + $0x30] sm:$0x33]
      %v587 = vld [vmem:[#allocation3 + $0x38] sm:$0x3]
      %v588 = vld [vmem:[%s3] sm:$0x7f]
      %590 = vset.pattern.permute.xlu0 0
      %591 = vperm.xlu0 %590, %v588
      %v592 = vpop.permute.xlu0 %591
      %v604 = vunpack.c.l.b16 %v578
      %v605 = vunpack.c.h.b16 %v578
      %v606 = vunpack.c.l.b16 %v579
      %v607 = vunpack.c.l.b16 %v580
      %v608 = vunpack.c.h.b16 %v580
      %v609 = vunpack.c.l.b16 %v581
      %v610 = vunpack.c.l.b16 %v582
      %v611 = vunpack.c.h.b16 %v582
      %v612 = vunpack.c.l.b16 %v583
      %v613 = vunpack.c.l.b16 %v584
      %v614 = vunpack.c.h.b16 %v584
      %v615 = vunpack.c.l.b16 %v585
      %v616 = vunpack.c.l.b16 %v586
      %v617 = vunpack.c.h.b16 %v586
      %v618 = vunpack.c.l.b16 %v587
      %v619 = vpack.c.b16 %v607, %v604
      %v620 = vpack.c.b16 %v608, %v605
      %v621 = vpack.c.b16 %v609, %v606
      %v622 = vpack.c.b16 %v613, %v610
      %v623 = vpack.c.b16 %v614, %v611
      %v624 = vpack.c.b16 %v615, %v612
      %v625 = vpack.c.b16 %v616, %v616
      %v626 = vpack.c.b16 %v617, %v617
      %v627 = vpack.c.b16 %v618, %v618
      %vm634 = vcmask 293888
      %v636 = vsel %vm634, %v577, 0
      %vm638 = vcmask 1041408
      %v640 = vsel %vm638, %v625, 0
      %v643 = vsel %vm638, %v626, 0
      %v646 = vsel %vm638, %v627, 0
      %648 = vmatprep.subr.bf16.mxu0 %v620
      %649 = vmatpush1.bf16.msra.mxu0 %v619
      %650 = vmatprep.subr.bf16.mxu0 %v623
      %651 = vmatpush1.bf16.msra.mxu0 %v622
      %652 = vmatprep.subr.bf16.mxu0 %v643
      %653 = vmatpush1.bf16.msra.mxu0 %v640
      %654 = vmatprep.subr.bf16.mxu0 0
      %655 = vmatpush1.bf16.msra.mxu0 0
      %656 = vmatprep.subr.bf16.mxu0 0
      %657 = vmatpush1.bf16.msra.mxu0 0
      %658 = vmatprep.subr.bf16.mxu0 0
      %659 = vmatpush1.bf16.msra.mxu0 0
      %660 = vmatprep.subr.bf16.mxu0 0
      %661 = vmatpush1.bf16.msra.mxu0 0
      %662 = vmatprep.subr.bf16.mxu0 0
      %663 = vmatpush1.bf16.msra.mxu0 0
      %664 = vmatprep.subr.bf16.mxu0 0
      %665 = vmatpush1.bf16.msra.mxu0 0
      %666 = vmatprep.subr.bf16.mxu0 0
      %667 = vmatpush1.bf16.msra.mxu0 0
      %668 = vmatprep.subr.bf16.mxu0 0
      %669 = vmatpush1.bf16.msra.mxu0 0
      %670 = vmatprep.subr.bf16.mxu0 0
      %671 = vmatpush1.bf16.msra.mxu0 0
      %672 = vmatprep.subr.bf16.mxu0 0
      %673 = vmatpush1.bf16.msra.mxu0 0
      %674 = vmatprep.subr.bf16.mxu0 0
      %675 = vmatpush1.bf16.msra.mxu0 0
      %676 = vmatprep.subr.bf16.mxu0 0
      %677 = vmatpush1.bf16.msra.mxu0 0
      %678 = vmatprep.subr.bf16.mxu0 0
      %679 = vmatpush1.bf16.msra.mxu0 0
      %680 = vmatprep.mubr.bf16.mxu0 0
      %681 = vmatmul.mubr.bf16.gmra.mrb[0].mxu0 %v636
      %v682 = vpop.f32.mrb[0].mxu0
      %v683 = vadd.f32 %v592, %v682
      %v684 = vpop.f32.mrb[0].mxu0
      %v685 = vadd.f32 %v592, %v684
      %v686 = vpop.f32.mrb[0].mxu0
      %v687 = vpop.f32.mrb[0].mxu0
      %688 = vdwg.mxu0
      %689 = vmatprep.subr.bf16.mxu0 0
      %690 = vmatpush1.bf16.msra.mxu0 %v621
      %691 = vmatprep.subr.bf16.mxu0 0
      %692 = vmatpush1.bf16.msra.mxu0 %v624
      %693 = vmatprep.subr.bf16.mxu0 0
      %694 = vmatpush1.bf16.msra.mxu0 %v646
      %695 = vmatprep.subr.bf16.mxu0 0
      %696 = vmatpush1.bf16.msra.mxu0 0
      %697 = vmatprep.subr.bf16.mxu0 0
      %698 = vmatpush1.bf16.msra.mxu0 0
      %699 = vmatprep.subr.bf16.mxu0 0
      %700 = vmatpush1.bf16.msra.mxu0 0
      %701 = vmatprep.subr.bf16.mxu0 0
      %702 = vmatpush1.bf16.msra.mxu0 0
      %703 = vmatprep.subr.bf16.mxu0 0
      %704 = vmatpush1.bf16.msra.mxu0 0
      %705 = vmatprep.subr.bf16.mxu0 0
      %706 = vmatpush1.bf16.msra.mxu0 0
      %707 = vmatprep.subr.bf16.mxu0 0
      %708 = vmatpush1.bf16.msra.mxu0 0
      %709 = vmatprep.subr.bf16.mxu0 0
      %710 = vmatpush1.bf16.msra.mxu0 0
      %711 = vmatprep.subr.bf16.mxu0 0
      %712 = vmatpush1.bf16.msra.mxu0 0
      %713 = vmatprep.subr.bf16.mxu0 0
      %714 = vmatpush1.bf16.msra.mxu0 0
      %715 = vmatprep.subr.bf16.mxu0 0
      %716 = vmatpush1.bf16.msra.mxu0 0
      %717 = vmatprep.subr.bf16.mxu0 0
      %718 = vmatpush1.bf16.msra.mxu0 0
      %719 = vmatprep.subr.bf16.mxu0 0
      %720 = vmatpush1.bf16.msra.mxu0 0
      %721 = vmatprep.mubr.bf16.mxu0 0
      %722 = vmatmul.mubr.bf16.gmra.mrb[0].mxu0 %v636
      %v723 = vpop.f32.mrb[0].mxu0
      %v724 = vadd.f32 %v592, %v723
      %v725 = vpop.f32.mrb[0].mxu0
      %v726 = vpop.f32.mrb[0].mxu0
      %v727 = vpop.f32.mrb[0].mxu0
      %728 = vdwg.mxu0
      %v729 = vld [vmem:[%s301] sm:$0x77]
      %v730 = vld [vmem:[%s301 + $0x8] sm:$0x7]
      %v733 = vcombine.low %v729, %v729
      %v734 = vcombine.low %v730, %v730
      %v737 = vadd.f32 %v683, %v733
      %v738 = vadd.f32 %v685, %v729
      %v739 = vadd.f32 %v724, %v734
      %v743 = vcombine.high %v737, %v738
      %v744 = vcombine.high %v739, %v739
      %747 = vst [vmem:[%s311] sm:$0x77] %v743
      %vm748 = vcmask 256000
      %749 = vst.msk [vmem:[%s311 + $0x8] sm:$0x7] %vm748, %v744
      %v750 = vlaneseq
      %v751 = vand.u32 %v750, 127
      %v752 = vadd.s32 %v751, 128
      %v753 = vadd.s32 %v751, 256
      %vm754 = vcmp.lt.s32.totalorder %v751, 0
      %v755 = vsub.s32 0, %v751
      %v756 = vsel %vm754, %v755, %v751
      %v757 = vmul.u32.u64.compose %v756, 3817748708
      %v758 = vextract.low.u32 %v757
      %v759 = vextract.high.u32 %v757
      %v760 = vshrl.u32 %v759, 4
      %v761 = vmul.u32 %v760, 18
      %v762 = vsub.s32 %v756, %v761
      %v763 = vsub.s32 0, %v762
      %v764 = vsel %vm754, %v763, %v762
      %vm765 = vcmp.lt.s32.totalorder %v752, 0
      %v766 = vsub.s32 0, %v752
      %v767 = vsel %vm765, %v766, %v752
      %v768 = vmul.u32.u64.compose %v767, 3817748708
      %v769 = vextract.low.u32 %v768
      %v770 = vextract.high.u32 %v768
      %v771 = vshrl.u32 %v770, 4
      %v772 = vmul.u32 %v771, 18
      %v773 = vsub.s32 %v767, %v772
      %v774 = vsub.s32 0, %v773
      %v775 = vsel %vm765, %v774, %v773
      %vm776 = vcmp.lt.s32.totalorder %v753, 0
      %v777 = vsub.s32 0, %v753
      %v778 = vsel %vm776, %v777, %v753
      %v779 = vmul.u32.u64.compose %v778, 3817748708
      %v780 = vextract.low.u32 %v779
      %v781 = vextract.high.u32 %v779
      %v782 = vshrl.u32 %v781, 4
      %v783 = vmul.u32 %v782, 18
      %v784 = vsub.s32 %v778, %v783
      %v785 = vsub.s32 0, %v784
      %v786 = vsel %vm776, %v785, %v784
      %vm787 = vcmp.ne.s32.totalorder %v764, 0
      %vm788 = vcmp.ne.s32.totalorder %v775, 0
      %vm789 = vcmp.ne.s32.totalorder %v786, 0
      %vm790 = vcmp.lt.s32.totalorder %v764, 0
      %vm791 = vcmp.lt.s32.totalorder %v775, 0
      %vm792 = vcmp.lt.s32.totalorder %v786, 0
      %vm793 = vmand %vm790, %vm787
      %vm794 = vmand %vm791, %vm788
      %vm795 = vmand %vm792, %vm789
      %v796 = vadd.s32 %v764, 18
      %v797 = vadd.s32 %v775, 18
      %v798 = vadd.s32 %v786, 18
      %v799 = vsel %vm793, %v796, %v764
      %v800 = vsel %vm794, %v797, %v775
      %v801 = vsel %vm795, %v798, %v786
      %vm802 = vcmp.lt.s32.totalorder %v799, 16
      %vm803 = vcmp.lt.s32.totalorder %v800, 16
      %vm804 = vcmp.lt.s32.totalorder %v801, 16
      %v805 = vsel %vm802, 1, 0
      %v806 = vsel %vm803, 1, 0
      %v807 = vsel %vm804, 1, 0
      %vm808 = vcmp.eq.s32.totalorder %v805, 1
      %vm809 = vcmp.eq.s32.totalorder %v806, 1
      %vm810 = vcmp.eq.s32.totalorder %v807, 1
      %v811 = vsel %vm808, %v737, 0.0
      %v812 = vsel %vm809, %v738, 0.0
      %v813 = vsel %vm810, %v739, 0.0
      %vm814 = vcmask 149504
      %815 = vst.msk [vmem:[#allocation2] sm:$0x7] %vm814, 0.0
      %vm816 = vcmask 567704
      %817 = vst.msk [vmem:[#allocation2 + $0x8] sm:$0x7] %vm816, 0.0
      %v821 = vcombine.high %v811, %v812
      %v822 = vcombine.high %v813, %v813
      %823 = vrot.lane.b32.xlu0 %v821, 19
      %v824 = vpop.permute.xlu0 %823
      %825 = vrot.lane.b32.xlu0 %v822, 19
      %v826 = vpop.permute.xlu0 %825
      %v827 = vrot.slane %v824, 4
      %vm828 = vcmask 154624
      %v829 = vsel %vm828, %v827, %v824
      %v830 = vsel %vm828, %v827, %v826
      %vm833 = vcmask 1042584
      %vm834 = vcmask 1046532
      %vm835 = vmor %vm834, %vm833
      %836 = vst.msk [vmem:[#allocation2] sm:$0x77] %vm835, %v829
      %vm837 = vcmask 411648
      %838 = vst.msk [vmem:[#allocation2 + $0x8] sm:$0x7] %vm837, %v830
      %v839 = vld [vmem:[#allocation2] sm:$0x77]
      %v840 = vld [vmem:[#allocation2 + $0x8] sm:$0x7]
      %v842 = vcombine.high %v839, %v839
      %844 = vst [vmem:[#allocation4] sm:$0x7] %v839
      %845 = vst [vmem:[#allocation4 + $0x8] sm:$0x7] %v842
      %846 = vst.msk [vmem:[#allocation4 + $0x10] sm:$0x7] %vm748, %v840
      %v847 = vld [vmem:[#allocation2] sm:$0x77]
      %v848 = vld [vmem:[#allocation2 + $0x8] sm:$0x7]
      %v851 = vcombine.high %v847, %v847
      %v852 = vrot.slane %v847, 5
      %v853 = vrot.slane %v851, 5
      %v854 = vrot.slane %v848, 5
      %855 = vrot.lane.b32.xlu0 %v852, 127
      %v856 = vpop.permute.xlu0 %855
      %857 = vrot.lane.b32.xlu0 %v853, 127
      %v858 = vpop.permute.xlu0 %857
      %859 = vrot.lane.b32.xlu0 %v854, 127
      %v860 = vpop.permute.xlu0 %859
      %vm861 = vcmask 1039360
      %v862 = vsel %vm861, %v856, %v858
      %v863 = vsel %vm861, %v858, %v860
      %867 = vst [vmem:[#allocation4] sm:$0x38] %v862
      %868 = vst [vmem:[#allocation4 + $0x8] sm:$0x38] %v863
      %vm869 = vcmask 259075
      %870 = vst.msk [vmem:[#allocation4 + $0x10] sm:$0x38] %vm869, %v860
      %v871 = vld [vmem:[#allocation2] sm:$0x77]
      %v872 = vld [vmem:[#allocation2 + $0x8] sm:$0x7]
      %v875 = vcombine.high %v871, %v871
      %v876 = vrot.slane %v871, 2
      %v877 = vrot.slane %v875, 2
      %v878 = vrot.slane %v872, 2
      %879 = vrot.lane.b32.xlu0 %v876, 126
      %v880 = vpop.permute.xlu0 %879
      %881 = vrot.lane.b32.xlu0 %v877, 126
      %v882 = vpop.permute.xlu0 %881
      %883 = vrot.lane.b32.xlu0 %v878, 126
      %v884 = vpop.permute.xlu0 %883
      %vm885 = vcmask 1031168
      %v886 = vsel %vm885, %v880, %v882
      %v887 = vsel %vm885, %v882, %v884
      %891 = vst [vmem:[#allocation4] sm:$0xc0] %v886
      %892 = vst [vmem:[#allocation4 + $0x8] sm:$0xc0] %v887
      %vm893 = vcmask 261126
      %894 = vst.msk [vmem:[#allocation4 + $0x10] sm:$0xc0] %vm893, %v884
      %895 = vst [vmem:[#allocation4 + $0x18] sm:$0x1] %v886
      %896 = vst [vmem:[#allocation4 + $0x20] sm:$0x1] %v887
      %vm897 = vcmask 253952
      %898 = vst.msk [vmem:[#allocation4 + $0x28] sm:$0x1] %vm897, %v884
      %v899 = vld [vmem:[#allocation2] sm:$0x77]
      %v900 = vld [vmem:[#allocation2 + $0x8] sm:$0x7]
      %v903 = vcombine.high %v899, %v899
      %v904 = vrot.slane %v899, 7
      %v905 = vrot.slane %v903, 7
      %v906 = vrot.slane %v900, 7
      %907 = vrot.lane.b32.xlu0 %v904, 110
      %v908 = vpop.permute.xlu0 %907
      %909 = vrot.lane.b32.xlu0 %v905, 110
      %v910 = vpop.permute.xlu0 %909
      %911 = vrot.lane.b32.xlu0 %v906, 110
      %v912 = vpop.permute.xlu0 %911
      %vm913 = vcmask 900096
      %v914 = vsel %vm913, %v908, %v910
      %v915 = vsel %vm913, %v910, %v912
      %919 = vst [vmem:[#allocation4 + $0x18] sm:$0xe] %v914
      %920 = vst [vmem:[#allocation4 + $0x20] sm:$0xe] %v915
      %vm921 = vcmask 257025
      %922 = vst.msk [vmem:[#allocation4 + $0x28] sm:$0xe] %vm921, %v912
      %v923 = vld [vmem:[#allocation2] sm:$0x77]
      %v924 = vld [vmem:[#allocation2 + $0x8] sm:$0x7]
      %v927 = vcombine.low %v923, %v923
      %v928 = vcombine.low %v924, %v924
      %929 = vrot.lane.b32.xlu0 %v927, 109
      %v930 = vpop.permute.xlu0 %929
      %931 = vrot.lane.b32.xlu0 %v923, 109
      %v932 = vpop.permute.xlu0 %931
      %933 = vrot.lane.b32.xlu0 %v928, 109
      %v934 = vpop.permute.xlu0 %933
      %vm935 = vcmask 891904
      %v936 = vsel %vm935, %v930, %v932
      %v937 = vsel %vm935, %v932, %v934
      %941 = vst [vmem:[#allocation4 + $0x18] sm:$0x70] %v936
      %942 = vst [vmem:[#allocation4 + $0x20] sm:$0x70] %v937
      %vm943 = vcmask 260100
      %944 = vst.msk [vmem:[#allocation4 + $0x28] sm:$0x70] %vm943, %v934
      %v945 = vld [vmem:[#allocation2] sm:$0x77]
      %v946 = vld [vmem:[#allocation2 + $0x8] sm:$0x7]
      %v949 = vcombine.high %v945, %v945
      %v950 = vrot.slane %v945, 1
      %v951 = vrot.slane %v949, 1
      %v952 = vrot.slane %v946, 1
      %953 = vrot.lane.b32.xlu0 %v950, 108
      %v954 = vpop.permute.xlu0 %953
      %955 = vrot.lane.b32.xlu0 %v951, 108
      %v956 = vpop.permute.xlu0 %955
      %957 = vrot.lane.b32.xlu0 %v952, 108
      %v958 = vpop.permute.xlu0 %957
      %vm959 = vcmask 883712
      %v960 = vsel %vm959, %v954, %v956
      %v961 = vsel %vm959, %v956, %v958
      %965 = vst [vmem:[#allocation4 + $0x18] sm:$0x80] %v960
      %966 = vst [vmem:[#allocation4 + $0x20] sm:$0x80] %v961
      %vm967 = vcmask 261127
      %968 = vst.msk [vmem:[#allocation4 + $0x28] sm:$0x80] %vm967, %v958
      %969 = vst [vmem:[#allocation4 + $0x30] sm:$0x3] %v960
      %970 = vst [vmem:[#allocation4 + $0x38] sm:$0x3] %v961
      %971 = vst.msk [vmem:[#allocation4 + $0x40] sm:$0x3] %vm333, %v958
      %v972 = vld [vmem:[#allocation2] sm:$0x77]
      %v973 = vld [vmem:[#allocation2 + $0x8] sm:$0x7]
      %v976 = vcombine.high %v972, %v972
      %v977 = vrot.slane %v972, 6
      %v978 = vrot.slane %v976, 6
      %v979 = vrot.slane %v973, 6
      %980 = vrot.lane.b32.xlu0 %v977, 92
      %v981 = vpop.permute.xlu0 %980
      %982 = vrot.lane.b32.xlu0 %v978, 92
      %v983 = vpop.permute.xlu0 %982
      %984 = vrot.lane.b32.xlu0 %v979, 92
      %v985 = vpop.permute.xlu0 %984
      %vm986 = vcmask 752640
      %v987 = vsel %vm986, %v981, %v983
      %v988 = vsel %vm986, %v983, %v985
      %992 = vst [vmem:[#allocation4 + $0x30] sm:$0x1c] %v987
      %993 = vst [vmem:[#allocation4 + $0x38] sm:$0x1c] %v988
      %vm994 = vcmask 258050
      %995 = vst.msk [vmem:[#allocation4 + $0x40] sm:$0x1c] %vm994, %v985
      %v996 = vld [vmem:[#allocation2] sm:$0x77]
      %v997 = vld [vmem:[#allocation2 + $0x8] sm:$0x7]
      %v1000 = vcombine.high %v996, %v996
      %v1001 = vrot.slane %v996, 3
      %v1002 = vrot.slane %v1000, 3
      %v1003 = vrot.slane %v997, 3
      %1004 = vrot.lane.b32.xlu0 %v1001, 91
      %v1005 = vpop.permute.xlu0 %1004
      %1006 = vrot.lane.b32.xlu0 %v1002, 91
      %v1007 = vpop.permute.xlu0 %1006
      %1008 = vrot.lane.b32.xlu0 %v1003, 91
      %v1009 = vpop.permute.xlu0 %1008
      %vm1010 = vcmask 744448
      %v1011 = vsel %vm1010, %v1005, %v1007
      %v1012 = vsel %vm1010, %v1007, %v1009
      %1016 = vst [vmem:[#allocation4 + $0x30] sm:$0xe0] %v1011
      %1017 = vst [vmem:[#allocation4 + $0x38] sm:$0xe0] %v1012
      %vm1018 = vcmask 261125
      %1019 = vst.msk [vmem:[#allocation4 + $0x40] sm:$0xe0] %vm1018, %v1009
      %v1020 = vld [vmem:[#allocation2] sm:$0x77]
      %v1021 = vld [vmem:[#allocation2 + $0x8] sm:$0x7]
      %v1024 = vcombine.high %v1020, %v1020
      %1025 = vrot.lane.b32.xlu0 %v1020, 90
      %v1026 = vpop.permute.xlu0 %1025
      %1027 = vrot.lane.b32.xlu0 %v1024, 90
      %v1028 = vpop.permute.xlu0 %1027
      %1029 = vrot.lane.b32.xlu0 %v1021, 90
      %v1030 = vpop.permute.xlu0 %1029
      %vm1031 = vcmask 736256
      %v1032 = vsel %vm1031, %v1026, %v1028
      %v1033 = vsel %vm1031, %v1028, %v1030
      %1037 = vst [vmem:[#allocation4 + $0x48] sm:$0x7] %v1032
      %1038 = vst [vmem:[#allocation4 + $0x50] sm:$0x7] %v1033
      %1039 = vst.msk [vmem:[#allocation4 + $0x58] sm:$0x7] %vm748, %v1030
      %v1040 = vld [vmem:[%s4] sm:$0x3]
      %v1041 = vld [vmem:[#allocation4] sm:$0xff]
      %v1042 = vld [vmem:[#allocation4 + $0x8] sm:$0xff]
      %v1043 = vld [vmem:[#allocation4 + $0x10] sm:$0xff]
      %v1044 = vld [vmem:[#allocation4 + $0x18] sm:$0xff]
      %v1045 = vld [vmem:[#allocation4 + $0x20] sm:$0xff]
      %v1046 = vld [vmem:[#allocation4 + $0x28] sm:$0xff]
      %v1047 = vld [vmem:[#allocation4 + $0x30] sm:$0xff]
      %v1048 = vld [vmem:[#allocation4 + $0x38] sm:$0xff]
      %v1049 = vld [vmem:[#allocation4 + $0x40] sm:$0xff]
      %v1050 = vld [vmem:[#allocation4 + $0x48] sm:$0x7]
      %v1051 = vld [vmem:[#allocation4 + $0x50] sm:$0x7]
      %v1052 = vld [vmem:[#allocation4 + $0x58] sm:$0x7]
      %v1053 = vpack.c.bf16 %v1044, %v1041
      %v1054 = vpack.c.bf16 %v1045, %v1042
      %v1055 = vpack.c.bf16 %v1046, %v1043
      %v1056 = vpack.c.bf16 %v1050, %v1047
      %v1057 = vpack.c.bf16 %v1051, %v1048
      %v1058 = vpack.c.bf16 %v1052, %v1049
      %v1059 = vld [vmem:[%s5] sm:$0xf]
      %1061 = vset.pattern.permute.xlu0 0
      %1062 = vperm.xlu0 %1061, %v1059
      %v1063 = vpop.permute.xlu0 %1062
      %vm1065 = vcmask 220160
      %v1067 = vsel %vm1065, %v1040, 0
      %vm1069 = vcmask 1044480
      %vm1070 = vcmask 1045504
      %v1071 = vsel %vm1069, 4294967295, 65535
      %v1072 = vsel %vm1070, %v1071, 0
      %v1074 = vand.u32 %v1056, %v1072
      %v1077 = vand.u32 %v1057, %v1072
      %v1080 = vand.u32 %v1058, %v1072
      %1082 = vmatprep.subr.bf16.mxu0 %v1054
      %1083 = vmatpush1.bf16.msra.mxu0 %v1053
      %1084 = vmatprep.subr.bf16.mxu0 %v1077
      %1085 = vmatpush1.bf16.msra.mxu0 %v1074
      %1086 = vmatprep.subr.bf16.mxu0 0
      %1087 = vmatpush1.bf16.msra.mxu0 0
      %1088 = vmatprep.subr.bf16.mxu0 0
      %1089 = vmatpush1.bf16.msra.mxu0 0
      %1090 = vmatprep.subr.bf16.mxu0 0
      %1091 = vmatpush1.bf16.msra.mxu0 0
      %1092 = vmatprep.subr.bf16.mxu0 0
      %1093 = vmatpush1.bf16.msra.mxu0 0
      %1094 = vmatprep.subr.bf16.mxu0 0
      %1095 = vmatpush1.bf16.msra.mxu0 0
      %1096 = vmatprep.subr.bf16.mxu0 0
      %1097 = vmatpush1.bf16.msra.mxu0 0
      %1098 = vmatprep.subr.bf16.mxu0 0
      %1099 = vmatpush1.bf16.msra.mxu0 0
      %1100 = vmatprep.subr.bf16.mxu0 0
      %1101 = vmatpush1.bf16.msra.mxu0 0
      %1102 = vmatprep.subr.bf16.mxu0 0
      %1103 = vmatpush1.bf16.msra.mxu0 0
      %1104 = vmatprep.subr.bf16.mxu0 0
      %1105 = vmatpush1.bf16.msra.mxu0 0
      %1106 = vmatprep.subr.bf16.mxu0 0
      %1107 = vmatpush1.bf16.msra.mxu0 0
      %1108 = vmatprep.subr.bf16.mxu0 0
      %1109 = vmatpush1.bf16.msra.mxu0 0
      %1110 = vmatprep.subr.bf16.mxu0 0
      %1111 = vmatpush1.bf16.msra.mxu0 0
      %1112 = vmatprep.subr.bf16.mxu0 0
      %1113 = vmatpush1.bf16.msra.mxu0 0
      %1114 = vmatprep.mubr.bf16.mxu0 0
      %1115 = vmatmul.mubr.bf16.gmra.mrb[0].mxu0 %v1067
      %v1116 = vpop.f32.mrb[0].mxu0
      %v1117 = vadd.f32 %v1063, %v1116
      %v1118 = vpop.f32.mrb[0].mxu0
      %v1119 = vadd.f32 %v1063, %v1118
      %v1120 = vpop.f32.mrb[0].mxu0
      %v1121 = vpop.f32.mrb[0].mxu0
      %1122 = vdwg.mxu0
      %1123 = vmatprep.subr.bf16.mxu0 0
      %1124 = vmatpush1.bf16.msra.mxu0 %v1055
      %1125 = vmatprep.subr.bf16.mxu0 0
      %1126 = vmatpush1.bf16.msra.mxu0 %v1080
      %1127 = vmatprep.subr.bf16.mxu0 0
      %1128 = vmatpush1.bf16.msra.mxu0 0
      %1129 = vmatprep.subr.bf16.mxu0 0
      %1130 = vmatpush1.bf16.msra.mxu0 0
      %1131 = vmatprep.subr.bf16.mxu0 0
      %1132 = vmatpush1.bf16.msra.mxu0 0
      %1133 = vmatprep.subr.bf16.mxu0 0
      %1134 = vmatpush1.bf16.msra.mxu0 0
      %1135 = vmatprep.subr.bf16.mxu0 0
      %1136 = vmatpush1.bf16.msra.mxu0 0
      %1137 = vmatprep.subr.bf16.mxu0 0
      %1138 = vmatpush1.bf16.msra.mxu0 0
      %1139 = vmatprep.subr.bf16.mxu0 0
      %1140 = vmatpush1.bf16.msra.mxu0 0
      %1141 = vmatprep.subr.bf16.mxu0 0
      %1142 = vmatpush1.bf16.msra.mxu0 0
      %1143 = vmatprep.subr.bf16.mxu0 0
      %1144 = vmatpush1.bf16.msra.mxu0 0
      %1145 = vmatprep.subr.bf16.mxu0 0
      %1146 = vmatpush1.bf16.msra.mxu0 0
      %1147 = vmatprep.subr.bf16.mxu0 0
      %1148 = vmatpush1.bf16.msra.mxu0 0
      %1149 = vmatprep.subr.bf16.mxu0 0
      %1150 = vmatpush1.bf16.msra.mxu0 0
      %1151 = vmatprep.subr.bf16.mxu0 0
      %1152 = vmatpush1.bf16.msra.mxu0 0
      %1153 = vmatprep.subr.bf16.mxu0 0
      %1154 = vmatpush1.bf16.msra.mxu0 0
      %1155 = vmatprep.mubr.bf16.mxu0 0
      %1156 = vmatmul.mubr.bf16.gmra.mrb[0].mxu0 %v1067
      %v1157 = vpop.f32.mrb[0].mxu0
      %v1158 = vadd.f32 %v1063, %v1157
      %v1159 = vpop.f32.mrb[0].mxu0
      %v1160 = vpop.f32.mrb[0].mxu0
      %v1161 = vpop.f32.mrb[0].mxu0
      %1162 = vdwg.mxu0
      %v1163 = vsub.f32 0.0, %v1117
      %v1164 = vsub.f32 0.0, %v1119
      %v1165 = vsub.f32 0.0, %v1158
      %v1166 = vmul.f32 %v1163, 1.442695
      %v1167 = vpow.pop %v1166
      %v1168 = vmul.f32 %v1164, 1.442695
      %v1169 = vpow.pop %v1168
      %v1170 = vmul.f32 %v1165, 1.442695
      %v1171 = vpow.pop %v1170
      %v1172 = vadd.f32 %v1167, 1.0
      %v1173 = vadd.f32 %v1169, 1.0
      %v1174 = vadd.f32 %v1171, 1.0
      %v1175 = vrcp.pop %v1172
      %v1176 = vrcp.pop %v1173
      %v1177 = vrcp.pop %v1174
      %v1178 = vld [vmem:[%s296] sm:$0x3f]
      %v1179 = vunpack.c.l.bf16 %v1178
      %v1180 = vunpack.c.h.bf16 %v1178
      %v1181 = vmul.f32 %v683, %v1175
      %v1182 = vmul.f32 %v685, %v1176
      %v1183 = vmul.f32 %v724, %v1177
      %v1186 = vcombine.high %v1179, %v1179
      %1187 = vrot.lane.b32.xlu0 %v1179, 109
      %v1188 = vpop.permute.xlu0 %1187
      %1189 = vrot.lane.b32.xlu0 %v1186, 109
      %v1190 = vpop.permute.xlu0 %1189
      %1191 = vrot.lane.b32.xlu0 %v1180, 109
      %v1192 = vpop.permute.xlu0 %1191
      %v1193 = vsel %vm935, %v1188, %v1190
      %v1194 = vsel %vm935, %v1190, %v1192
      %v1198 = vadd.f32 %v1181, %v1193
      %v1199 = vadd.f32 %v1182, %v1194
      %v1200 = vadd.f32 %v1183, %v1192
      %v1203 = vcombine.low %v1198, %v1199
      %1205 = vst [vmem:[%s306] sm:$0xff] %v1203
      %vm1206 = vcmask 257024
      %1207 = vst.msk [vmem:[%s306 + $0x8] sm:$0xf] %vm1206, %v1200
      %p1208 = scmp.lt.s32.totalorder %s19, 1
      %s1209 = scalar_select %p1208, %s19, 1
      %s1210 = smul.addr %s1209, 3
      %s1211 = smul.addr %s1210, 4
      %s1212 = scalar_lea.vmem %s6, %s1211
      %p1213 = scmp.lt.s32.totalorder %s19, 1
      %s1214 = scalar_select %p1213, %s19, 1
      %s1215 = smul.addr %s1214, 3
      %s1216 = smul.addr %s1215, 4
      %s1217 = scalar_lea.vmem %s7, %s1216
      // Predicated region
      $region45: #{sam_forward.1} parent=43 // pred_check
        %p1218 = pneg %p173
      $region46: #{sam_forward.1} parent=43 // pred_check_branch
        %1220 = sbr.rel (%p1218) target = $region48
      $region47: #{sam_forward.1} parent=43 // pred_region
        _
      $region48: #{sam_forward.1} parent=43 // pred_fallthru
        _
      // Predicated region
      $region49: #{sam_forward.1} parent=43 // pred_check
        %p1221 = pneg %p199
      $region50: #{sam_forward.1} parent=43 // pred_check_branch
        %1223 = sbr.rel (%p1221) target = $region52
      $region51: #{sam_forward.1} parent=43 // pred_region
        _
      $region52: #{sam_forward.1} parent=43 // pred_fallthru
        _
    $region44: #{sam_forward.1} parent=5 // pred_fallthru
      _
    %p1224 = scmp.le.s32.totalorder 2, %s14
    // Predicated region
    $region53: #{sam_forward.1} parent=5 // pred_check
      %p1225 = pneg %p1224
    $region54: #{sam_forward.1} parent=5 // pred_check_branch
      %1227 = sbr.rel (%p1225) target = $region56
    $region55: #{sam_forward.1} parent=5 // pred_region
      %s1228 = ssub.s32 %s14, 2
      // Predicated region
      $region57: #{sam_forward.1} parent=55 // pred_check
        %p1229 = pneg %p179
      $region58: #{sam_forward.1} parent=55 // pred_check_branch
        %1231 = sbr.rel (%p1229) target = $region60
      $region59: #{sam_forward.1} parent=55 // pred_region
        %p1232 = scmp.lt.s32.totalorder %s20, 1
        %s1233 = scalar_select %p1232, %s20, 1
        %s1234 = smul.addr %s1233, 3
        %s1235 = smul.addr %s1234, 4
        %s1236 = scalar_lea.vmem %s6, %s1235
      $region60: #{sam_forward.1} parent=55 // pred_fallthru
        _
      // Predicated region
      $region61: #{sam_forward.1} parent=55 // pred_check
        %p1237 = pneg %p205
      $region62: #{sam_forward.1} parent=55 // pred_check_branch
        %1239 = sbr.rel (%p1237) target = $region64
      $region63: #{sam_forward.1} parent=55 // pred_region
        %p1240 = scmp.lt.s32.totalorder %s20, 1
        %s1241 = scalar_select %p1240, %s20, 1
        %s1242 = smul.addr %s1241, 3
        %s1243 = smul.addr %s1242, 4
        %s1244 = scalar_lea.vmem %s7, %s1243
      $region64: #{sam_forward.1} parent=55 // pred_fallthru
        _
    $region56: #{sam_forward.1} parent=5 // pred_fallthru
      _
  $region6: #{sam_forward.1} parent=0 // loop_footer
    %s18 = sadd.s32 1, %s14
  $region7: #{sam_forward.1} parent=0 // loop_footer_branch
    %13 = sbr.rel target = $region3
  $region8: #{sam_forward.1} parent=0 // loop_exit
    _

</llo_original>
